<compile_context>
chip_gen: v7x
topology: tpu7x:2x2x1
jax: 0.10.0
libtpu: 0.0.40
codegen_flags: <defaults>
</compile_context>

<pallas_src>
import jax
import jax.numpy as jnp
from jax import lax
from jax.experimental import pallas as pl
from jax.experimental.pallas import tpu as pltpu

EPS = 1e-5
MXU_DTYPE = jnp.bfloat16   # matmul operand dtype (accumulation stays f32)


# ----------------------------- kernel helpers -----------------------------

def _row_shift(a, dh):
    """shifted[h, :] = a[h + dh, :], zero where h + dh is out of range."""
    if dh == 0:
        return a
    H = a.shape[0]
    r = lax.broadcasted_iota(jnp.int32, (H, H), 0)
    c = lax.broadcasted_iota(jnp.int32, (H, H), 1)
    s = (c - r == dh).astype(a.dtype)           # one-hot shift matrix, zero rows at border
    return jnp.dot(s, a, preferred_element_type=jnp.float32)


def _band_conv(a, w_ref):
    """3x3 'SAME' conv in lane-packed (H, W*Cin) layout as 3 banded matmuls."""
    acc = None
    for t, dh in enumerate((-1, 0, 1)):
        src = _row_shift(a, dh).astype(MXU_DTYPE)          # bf16 MXU operand
        term = jnp.dot(src, w_ref[t], preferred_element_type=jnp.float32)
        acc = term if acc is None else acc + term
    return acc


# ------------------------------ Pallas kernels -----------------------------

def _stage1_kernel(x_ref, s1_ref, t1_ref, w1_ref, b1_ref, h1_ref):
    # h1 = conv1(relu(bn1(x)))   (3x3, Cin -> Cin); one image per grid step.
    a = jnp.maximum(x_ref[0] * s1_ref[...] + t1_ref[...], 0.0)    # folded BN1 + ReLU (f32 VPU)
    h1_ref[0] = _band_conv(a, w1_ref) + b1_ref[...]


def _stage2_kernel(h1_ref, x_ref, s2_ref, t2_ref, w2_ref, b2_ref,
                   wsc_ref, sb_ref, out_ref):
    # out = conv2(relu(bn2(h1))) + shortcut_1x1(x); output rows are 128 lanes wide.
    a = jnp.maximum(h1_ref[0] * s2_ref[...] + t2_ref[...], 0.0)   # folded BN2 + ReLU
    o = _band_conv(a, w2_ref) + b2_ref[...]
    sc = jnp.dot(x_ref[0].astype(MXU_DTYPE), wsc_ref[...],
                 preferred_element_type=jnp.float32) + sb_ref[...]
    out_ref[0] = o + sc


# ------------------------------ wrapper helpers -----------------------------

def _bn_scale_shift(t_nhwc, gamma, beta):
    # training-mode BatchNorm2d folded into y = x*scale + shift
    # (biased batch variance, one-pass E[x^2] - mean^2)
    mean = jnp.mean(t_nhwc, axis=(0, 1, 2))
    var = jnp.maximum(jnp.mean(t_nhwc * t_nhwc, axis=(0, 1, 2)) - mean * mean, 0.0)
    scale = gamma / jnp.sqrt(var + EPS)
    return scale, beta - mean * scale


def _tile_lanes(v, W):
    # per-channel (C,) vector -> (1, W*C) lane vector matching the (H, W*C) packing
    return jnp.tile(v, W)[None, :]


def _band_weights(k_hwio, W):
    # (3, 3, Cin, Cout) kernel -> 3 block-banded (W*Cin, W*Cout) matrices, one per dh.
    # Band[dh][w*Cin+ci, w'*Cout+co] = K[dh+1, (w-w')+1, ci, co] for |w-w'| <= 1.
    _, _, cin, cout = k_hwio.shape
    bands = []
    for khi in range(3):
        m = jnp.zeros((W * cin, W * cout), jnp.float32)
        for kwi in range(3):
            dw = kwi - 1
            sel = jnp.eye(W, W, k=-dw, dtype=jnp.float32)   # sel[w, w'] = 1 iff w == w' + dw
            m = m + jnp.kron(sel, k_hwio[khi, kwi])
        bands.append(m)
    return jnp.stack(bands, axis=0)


# --------------------------------- wrapper ----------------------------------

def residual_block(x_nchw, p):
    B, Cin, H, W = x_nchw.shape
    Cout = p["ws"].shape[-1]
    WCin, WCout = W * Cin, W * Cout

    x_nhwc = jnp.transpose(x_nchw, (0, 2, 3, 1))        # NCHW -> NHWC (layout plumbing)
    xp = x_nhwc.reshape(B, H, WCin)                     # lane-packed (H, W*Cin) rows

    # one-time weight preprocessing: banded conv matrices, bf16 MXU operands
    w1b = _band_weights(p["w1"], W).astype(MXU_DTYPE)                 # (3, WCin, WCin)
    w2b = _band_weights(p["w2"], W).astype(MXU_DTYPE)                 # (3, WCin, WCout)
    wscb = jnp.kron(jnp.eye(W, dtype=jnp.float32), p["ws"]).astype(MXU_DTYPE)  # 1x1 conv band
    b1t = _tile_lanes(p["c1b"], W)
    b2t = _tile_lanes(p["c2b"], W)
    sbt = _tile_lanes(p["sb"], W)

    cparams = pltpu.CompilerParams(
        dimension_semantics=("parallel",),        # batch grid -> megacore / v7x dual TC
        # TODO(synk): re-derive tile sizes / VMEM budget for v7x (64 MiB) at production shapes.
        vmem_limit_bytes=32 * 1024 * 1024,
    )

    # BN1 statistics (global over N,H,W) hoisted out of the tiled kernel.
    s1, t1 = _bn_scale_shift(x_nhwc, p["g1"], p["b1"])
    s1t, t1t = _tile_lanes(s1, W), _tile_lanes(t1, W)

    # stage 1: h1 = conv1(relu(bn1(x)))
    h1 = pl.pallas_call(
        _stage1_kernel,
        out_shape=jax.ShapeDtypeStruct((B, H, WCin), jnp.float32),
        grid_spec=pltpu.PrefetchScalarGridSpec(
            num_scalar_prefetch=0,
            grid=(B,),
            in_specs=[
                pl.BlockSpec((1, H, WCin), lambda b: (b, 0, 0)),
                pl.BlockSpec((1, WCin), lambda b: (0, 0)),
                pl.BlockSpec((1, WCin), lambda b: (0, 0)),
                pl.BlockSpec((3, WCin, WCin), lambda b: (0, 0, 0)),
                pl.BlockSpec((1, WCin), lambda b: (0, 0)),
            ],
            out_specs=pl.BlockSpec((1, H, WCin), lambda b: (b, 0, 0)),
        ),
        compiler_params=cparams,
    )(xp, s1t, t1t, w1b, b1t)

    # BN2 statistics need the full-batch conv1 output -> computed between the passes.
    s2, t2 = _bn_scale_shift(h1.reshape(B, H, W, Cin), p["g2"], p["b2"])
    s2t, t2t = _tile_lanes(s2, W), _tile_lanes(t2, W)

    # stage 2: out = conv2(relu(bn2(h1))) + shortcut(x); lane-dense (.., W*Cout)=128 output.
    out = pl.pallas_call(
        _stage2_kernel,
        out_shape=jax.ShapeDtypeStruct((B, H, WCout), jnp.float32),
        grid_spec=pltpu.PrefetchScalarGridSpec(
            num_scalar_prefetch=0,
            grid=(B,),
            in_specs=[
                pl.BlockSpec((1, H, WCin), lambda b: (b, 0, 0)),
                pl.BlockSpec((1, H, WCin), lambda b: (b, 0, 0)),
                pl.BlockSpec((1, WCin), lambda b: (0, 0)),
                pl.BlockSpec((1, WCin), lambda b: (0, 0)),
                pl.BlockSpec((3, WCin, WCout), lambda b: (0, 0, 0)),
                pl.BlockSpec((1, WCout), lambda b: (0, 0)),
                pl.BlockSpec((WCin, WCout), lambda b: (0, 0)),
                pl.BlockSpec((1, WCout), lambda b: (0, 0)),
            ],
            out_specs=pl.BlockSpec((1, H, WCout), lambda b: (b, 0, 0)),
        ),
        compiler_params=cparams,
    )(h1, xp, s2t, t2t, w2b, b2t, wscb, sbt)

    out_nhwc = out.reshape(B, H, W, Cout)
    return jnp.transpose(out_nhwc, (0, 3, 1, 2))         # back to NCHW (module convention)


# -------------------------------- reference ---------------------------------

def reference(x_nchw, p):
    # Pure-JAX reference (NHWC internally).  Conv / matmul inputs are rounded to
    # bf16 to mirror the kernel's MXU operand precision (f32 accumulation);
    # everything else is f32 like the PyTorch module.
    x = jnp.transpose(x_nchw, (0, 2, 3, 1))
    B, H, W, Cin = x.shape
    Cout = p["ws"].shape[-1]

    def conv3x3(t, w):
        return lax.conv_general_dilated(
            t.astype(MXU_DTYPE), w.astype(MXU_DTYPE), (1, 1), "SAME",
            dimension_numbers=("NHWC", "HWIO", "NHWC"),
            preferred_element_type=jnp.float32)

    s1, t1 = _bn_scale_shift(x, p["g1"], p["b1"])
    a1 = jnp.maximum(x * s1 + t1, 0.0)
    h1 = conv3x3(a1, p["w1"]) + p["c1b"]
    s2, t2 = _bn_scale_shift(h1, p["g2"], p["b2"])
    a2 = jnp.maximum(h1 * s2 + t2, 0.0)
    o = conv3x3(a2, p["w2"]) + p["c2b"]
    sc = jnp.dot(x.reshape(-1, Cin).astype(MXU_DTYPE), p["ws"].astype(MXU_DTYPE),
                 preferred_element_type=jnp.float32).reshape(B, H, W, Cout) + p["sb"]
    return jnp.transpose(o + sc, (0, 3, 1, 2))


if __name__ == "__main__":
    B, Cin, Cout, H, W = 2, 4, 8, 16, 16

    key = jax.random.PRNGKey(0)
    ks = jax.random.split(key, 12)

    # input in PyTorch NCHW convention
    x_nchw = jax.random.normal(ks[0], (B, Cin, H, W), jnp.float32)

    params = {
        # BatchNorm affine params
        "g1": 1.0 + 0.1 * jax.random.normal(ks[1], (Cin,), jnp.float32),
        "b1": 0.1 * jax.random.normal(ks[2], (Cin,), jnp.float32),
        "g2": 1.0 + 0.1 * jax.random.normal(ks[3], (Cin,), jnp.float32),
        "b2": 0.1 * jax.random.normal(ks[4], (Cin,), jnp.float32),
        # conv1: 3x3 Cin->Cin (HWIO), conv2: 3x3 Cin->Cout (HWIO)
        "w1": 0.2 * jax.random.normal(ks[5], (3, 3, Cin, Cin), jnp.float32),
        "c1b": 0.05 * jax.random.normal(ks[6], (Cin,), jnp.float32),
        "w2": 0.2 * jax.random.normal(ks[7], (3, 3, Cin, Cout), jnp.float32),
        "c2b": 0.05 * jax.random.normal(ks[8], (Cout,), jnp.float32),
        # shortcut 1x1 conv Cin->Cout
        "ws": 0.2 * jax.random.normal(ks[9], (Cin, Cout), jnp.float32),
        "sb": 0.05 * jax.random.normal(ks[10], (Cout,), jnp.float32),
    }

    out = jax.block_until_ready(jax.jit(residual_block)(x_nchw, params))
    ref = jax.block_until_ready(reference(x_nchw, params))

    assert out.shape == (B, Cout, H, W)
    err = float(jnp.max(jnp.abs(out - ref)))
    assert jnp.allclose(out, ref, rtol=1e-2, atol=1e-2), err

    # TODO(synk): BatchNorm running_mean/running_var buffer updates (training-time
    # side effect) have no output-affecting equivalent here; only the forward
    # batch-statistics math is implemented.
    print("KERNEL_OK")
</pallas_src>

<mosaic_0001>
module attributes {stable_mosaic.version = 11 : i64} {
  func.func @_stage1_kernel(%arg0: i32, %arg1: memref<1x16x64xf32, #tpu.memory_space<vmem>>, %arg2: memref<1x64xf32, #tpu.memory_space<vmem>>, %arg3: memref<1x64xf32, #tpu.memory_space<vmem>>, %arg4: memref<3x64x64xbf16, #tpu.memory_space<vmem>>, %arg5: memref<1x64xf32, #tpu.memory_space<vmem>>, %arg6: memref<1x16x64xf32, #tpu.memory_space<vmem>>) attributes {dimension_semantics = [#tpu.dimension_semantics<parallel>], iteration_bounds = array<i64: 2>, scalar_prefetch = 0 : i64, scratch_operands = 0 : i64, tpu.core_type = #tpu.core_type<tc>, window_params = [{transform_indices = @transform_0, window_bounds = array<i64: 1, 16, 64>}, {pipeline_mode = #tpu.pipeline_mode<synchronous>, transform_indices = @transform_1, window_bounds = array<i64: 1, 64>}, {pipeline_mode = #tpu.pipeline_mode<synchronous>, transform_indices = @transform_2, window_bounds = array<i64: 1, 64>}, {pipeline_mode = #tpu.pipeline_mode<synchronous>, transform_indices = @transform_3, window_bounds = array<i64: 3, 64, 64>}, {pipeline_mode = #tpu.pipeline_mode<synchronous>, transform_indices = @transform_4, window_bounds = array<i64: 1, 64>}, {transform_indices = @transform_5, window_bounds = array<i64: 1, 16, 64>}]} {
    %c0 = arith.constant 0 : index
    %c0_0 = arith.constant 0 : index
    %c0_1 = arith.constant 0 : index
    %0 = vector.load %arg1[%c0, %c0_0, %c0_1] : memref<1x16x64xf32, #tpu.memory_space<vmem>>, vector<1x16x64xf32>
    %1 = vector.shape_cast %0 : vector<1x16x64xf32> to vector<16x64xf32>
    %c0_2 = arith.constant 0 : index
    %c0_3 = arith.constant 0 : index
    %2 = vector.load %arg2[%c0_2, %c0_3] : memref<1x64xf32, #tpu.memory_space<vmem>>, vector<1x64xf32>
    %3 = vector.broadcast %2 : vector<1x64xf32> to vector<16x64xf32>
    %4 = arith.mulf %1, %3 : vector<16x64xf32>
    %c0_4 = arith.constant 0 : index
    %c0_5 = arith.constant 0 : index
    %5 = vector.load %arg3[%c0_4, %c0_5] : memref<1x64xf32, #tpu.memory_space<vmem>>, vector<1x64xf32>
    %6 = vector.broadcast %5 : vector<1x64xf32> to vector<16x64xf32>
    %7 = arith.addf %4, %6 : vector<16x64xf32>
    %cst = arith.constant 0.000000e+00 : f32
    %8 = vector.broadcast %cst : f32 to vector<16x64xf32>
    %9 = arith.maximumf %7, %8 : vector<16x64xf32>
    %10 = tpu.iota {dimensions = array<i32: 0>} : vector<16x16xi32>
    %11 = tpu.iota {dimensions = array<i32: 1>} : vector<16x16xi32>
    %12 = arith.subi %11, %10 : vector<16x16xi32>
    %c-1_i32 = arith.constant -1 : i32
    %13 = vector.broadcast %c-1_i32 : i32 to vector<16x16xi32>
    %14 = arith.cmpi eq, %12, %13 : vector<16x16xi32>
    %15 = arith.extui %14 : vector<16x16xi1> to vector<16x16xi32>
    %16 = arith.sitofp %15 : vector<16x16xi32> to vector<16x16xf32>
    %cst_6 = arith.constant dense<0.000000e+00> : vector<16x64xf32>
    %17 = tpu.matmul %16, %9, %cst_6 {dimension_numbers = #tpu.dot_dimension_numbers<[1], [0], [0], [1], [0, 0, 1, 1], [], []>} : vector<16x16xf32>, vector<16x64xf32>, vector<16x64xf32> -> vector<16x64xf32>
    %18 = arith.truncf %17 : vector<16x64xf32> to vector<16x64xbf16>
    %c0_7 = arith.constant 0 : index
    %c0_8 = arith.constant 0 : index
    %c0_9 = arith.constant 0 : index
    %19 = vector.load %arg4[%c0_7, %c0_8, %c0_9] : memref<3x64x64xbf16, #tpu.memory_space<vmem>>, vector<1x64x64xbf16>
    %20 = vector.shape_cast %19 : vector<1x64x64xbf16> to vector<64x64xbf16>
    %cst_10 = arith.constant dense<0.000000e+00> : vector<16x64xf32>
    %21 = tpu.matmul %18, %20, %cst_10 {dimension_numbers = #tpu.dot_dimension_numbers<[1], [0], [0], [1], [0, 0, 1, 1], [], []>} : vector<16x64xbf16>, vector<64x64xbf16>, vector<16x64xf32> -> vector<16x64xf32>
    %22 = arith.truncf %9 : vector<16x64xf32> to vector<16x64xbf16>
    %c1 = arith.constant 1 : index
    %c0_11 = arith.constant 0 : index
    %c0_12 = arith.constant 0 : index
    %23 = vector.load %arg4[%c1, %c0_11, %c0_12] : memref<3x64x64xbf16, #tpu.memory_space<vmem>>, vector<1x64x64xbf16>
    %24 = vector.shape_cast %23 : vector<1x64x64xbf16> to vector<64x64xbf16>
    %cst_13 = arith.constant dense<0.000000e+00> : vector<16x64xf32>
    %25 = tpu.matmul %22, %24, %cst_13 {dimension_numbers = #tpu.dot_dimension_numbers<[1], [0], [0], [1], [0, 0, 1, 1], [], []>} : vector<16x64xbf16>, vector<64x64xbf16>, vector<16x64xf32> -> vector<16x64xf32>
    %26 = arith.addf %21, %25 : vector<16x64xf32>
    %27 = tpu.iota {dimensions = array<i32: 0>} : vector<16x16xi32>
    %28 = tpu.iota {dimensions = array<i32: 1>} : vector<16x16xi32>
    %29 = arith.subi %28, %27 : vector<16x16xi32>
    %c1_i32 = arith.constant 1 : i32
    %30 = vector.broadcast %c1_i32 : i32 to vector<16x16xi32>
    %31 = arith.cmpi eq, %29, %30 : vector<16x16xi32>
    %32 = arith.extui %31 : vector<16x16xi1> to vector<16x16xi32>
    %33 = arith.sitofp %32 : vector<16x16xi32> to vector<16x16xf32>
    %cst_14 = arith.constant dense<0.000000e+00> : vector<16x64xf32>
    %34 = tpu.matmul %33, %9, %cst_14 {dimension_numbers = #tpu.dot_dimension_numbers<[1], [0], [0], [1], [0, 0, 1, 1], [], []>} : vector<16x16xf32>, vector<16x64xf32>, vector<16x64xf32> -> vector<16x64xf32>
    %35 = arith.truncf %34 : vector<16x64xf32> to vector<16x64xbf16>
    %c2 = arith.constant 2 : index
    %c0_15 = arith.constant 0 : index
    %c0_16 = arith.constant 0 : index
    %36 = vector.load %arg4[%c2, %c0_15, %c0_16] : memref<3x64x64xbf16, #tpu.memory_space<vmem>>, vector<1x64x64xbf16>
    %37 = vector.shape_cast %36 : vector<1x64x64xbf16> to vector<64x64xbf16>
    %cst_17 = arith.constant dense<0.000000e+00> : vector<16x64xf32>
    %38 = tpu.matmul %35, %37, %cst_17 {dimension_numbers = #tpu.dot_dimension_numbers<[1], [0], [0], [1], [0, 0, 1, 1], [], []>} : vector<16x64xbf16>, vector<64x64xbf16>, vector<16x64xf32> -> vector<16x64xf32>
    %39 = arith.addf %26, %38 : vector<16x64xf32>
    %c0_18 = arith.constant 0 : index
    %c0_19 = arith.constant 0 : index
    %40 = vector.load %arg5[%c0_18, %c0_19] : memref<1x64xf32, #tpu.memory_space<vmem>>, vector<1x64xf32>
    %41 = vector.broadcast %40 : vector<1x64xf32> to vector<16x64xf32>
    %42 = arith.addf %39, %41 : vector<16x64xf32>
    %c0_20 = arith.constant 0 : index
    %c0_21 = arith.constant 0 : index
    %c0_22 = arith.constant 0 : index
    %43 = vector.load %arg6[%c0_20, %c0_21, %c0_22] : memref<1x16x64xf32, #tpu.memory_space<vmem>>, vector<1x16x64xf32>
    %44 = vector.shape_cast %43 : vector<1x16x64xf32> to vector<16x64xf32>
    %45 = vector.shape_cast %42 : vector<16x64xf32> to vector<1x16x64xf32>
    tpu.vector_store %arg6[%c0_20, %c0_21, %c0_22], %45 {strides = array<i32>} : memref<1x16x64xf32, #tpu.memory_space<vmem>>, vector<1x16x64xf32>,
    return
  }
  func.func @transform_0(%arg0: i32) -> (i32, i32, i32) {
    %c0_i32 = arith.constant 0 : i32
    %c0_i32_0 = arith.constant 0 : i32
    %c0_i32_1 = arith.constant 0 : i32
    return %arg0, %c0_i32, %c0_i32_0 : i32, i32, i32
  }
  func.func @transform_1(%arg0: i32) -> (i32, i32) {
    %c0_i32 = arith.constant 0 : i32
    %c0_i32_0 = arith.constant 0 : i32
    %c0_i32_1 = arith.constant 0 : i32
    return %c0_i32, %c0_i32_0 : i32, i32
  }
  func.func @transform_2(%arg0: i32) -> (i32, i32) {
    %c0_i32 = arith.constant 0 : i32
    %c0_i32_0 = arith.constant 0 : i32
    %c0_i32_1 = arith.constant 0 : i32
    return %c0_i32, %c0_i32_0 : i32, i32
  }
  func.func @transform_3(%arg0: i32) -> (i32, i32, i32) {
    %c0_i32 = arith.constant 0 : i32
    %c0_i32_0 = arith.constant 0 : i32
    %c0_i32_1 = arith.constant 0 : i32
    %c0_i32_2 = arith.constant 0 : i32
    return %c0_i32, %c0_i32_0, %c0_i32_1 : i32, i32, i32
  }
  func.func @transform_4(%arg0: i32) -> (i32, i32) {
    %c0_i32 = arith.constant 0 : i32
    %c0_i32_0 = arith.constant 0 : i32
    %c0_i32_1 = arith.constant 0 : i32
    return %c0_i32, %c0_i32_0 : i32, i32
  }
  func.func @transform_5(%arg0: i32) -> (i32, i32, i32) {
    %c0_i32 = arith.constant 0 : i32
    %c0_i32_0 = arith.constant 0 : i32
    %c0_i32_1 = arith.constant 0 : i32
    return %arg0, %c0_i32, %c0_i32_0 : i32, i32, i32
  }
}

module attributes {stable_mosaic.version = 11 : i64} {
  func.func @_stage2_kernel(%arg0: i32, %arg1: memref<1x16x64xf32, #tpu.memory_space<vmem>>, %arg2: memref<1x16x64xf32, #tpu.memory_space<vmem>>, %arg3: memref<1x64xf32, #tpu.memory_space<vmem>>, %arg4: memref<1x64xf32, #tpu.memory_space<vmem>>, %arg5: memref<3x64x128xbf16, #tpu.memory_space<vmem>>, %arg6: memref<1x128xf32, #tpu.memory_space<vmem>>, %arg7: memref<64x128xbf16, #tpu.memory_space<vmem>>, %arg8: memref<1x128xf32, #tpu.memory_space<vmem>>, %arg9: memref<1x16x128xf32, #tpu.memory_space<vmem>>) attributes {dimension_semantics = [#tpu.dimension_semantics<parallel>], iteration_bounds = array<i64: 2>, scalar_prefetch = 0 : i64, scratch_operands = 0 : i64, tpu.core_type = #tpu.core_type<tc>, window_params = [{transform_indices = @transform_0, window_bounds = array<i64: 1, 16, 64>}, {transform_indices = @transform_1, window_bounds = array<i64: 1, 16, 64>}, {pipeline_mode = #tpu.pipeline_mode<synchronous>, transform_indices = @transform_2, window_bounds = array<i64: 1, 64>}, {pipeline_mode = #tpu.pipeline_mode<synchronous>, transform_indices = @transform_3, window_bounds = array<i64: 1, 64>}, {pipeline_mode = #tpu.pipeline_mode<synchronous>, transform_indices = @transform_4, window_bounds = array<i64: 3, 64, 128>}, {pipeline_mode = #tpu.pipeline_mode<synchronous>, transform_indices = @transform_5, window_bounds = array<i64: 1, 128>}, {pipeline_mode = #tpu.pipeline_mode<synchronous>, transform_indices = @transform_6, window_bounds = array<i64: 64, 128>}, {pipeline_mode = #tpu.pipeline_mode<synchronous>, transform_indices = @transform_7, window_bounds = array<i64: 1, 128>}, {transform_indices = @transform_8, window_bounds = array<i64: 1, 16, 128>}]} {
    %c0 = arith.constant 0 : index
    %c0_0 = arith.constant 0 : index
    %c0_1 = arith.constant 0 : index
    %0 = vector.load %arg1[%c0, %c0_0, %c0_1] : memref<1x16x64xf32, #tpu.memory_space<vmem>>, vector<1x16x64xf32>
    %1 = vector.shape_cast %0 : vector<1x16x64xf32> to vector<16x64xf32>
    %c0_2 = arith.constant 0 : index
    %c0_3 = arith.constant 0 : index
    %2 = vector.load %arg3[%c0_2, %c0_3] : memref<1x64xf32, #tpu.memory_space<vmem>>, vector<1x64xf32>
    %3 = vector.broadcast %2 : vector<1x64xf32> to vector<16x64xf32>
    %4 = arith.mulf %1, %3 : vector<16x64xf32>
    %c0_4 = arith.constant 0 : index
    %c0_5 = arith.constant 0 : index
    %5 = vector.load %arg4[%c0_4, %c0_5] : memref<1x64xf32, #tpu.memory_space<vmem>>, vector<1x64xf32>
    %6 = vector.broadcast %5 : vector<1x64xf32> to vector<16x64xf32>
    %7 = arith.addf %4, %6 : vector<16x64xf32>
    %cst = arith.constant 0.000000e+00 : f32
    %8 = vector.broadcast %cst : f32 to vector<16x64xf32>
    %9 = arith.maximumf %7, %8 : vector<16x64xf32>
    %10 = tpu.iota {dimensions = array<i32: 0>} : vector<16x16xi32>
    %11 = tpu.iota {dimensions = array<i32: 1>} : vector<16x16xi32>
    %12 = arith.subi %11, %10 : vector<16x16xi32>
    %c-1_i32 = arith.constant -1 : i32
    %13 = vector.broadcast %c-1_i32 : i32 to vector<16x16xi32>
    %14 = arith.cmpi eq, %12, %13 : vector<16x16xi32>
    %15 = arith.extui %14 : vector<16x16xi1> to vector<16x16xi32>
    %16 = arith.sitofp %15 : vector<16x16xi32> to vector<16x16xf32>
    %cst_6 = arith.constant dense<0.000000e+00> : vector<16x64xf32>
    %17 = tpu.matmul %16, %9, %cst_6 {dimension_numbers = #tpu.dot_dimension_numbers<[1], [0], [0], [1], [0, 0, 1, 1], [], []>} : vector<16x16xf32>, vector<16x64xf32>, vector<16x64xf32> -> vector<16x64xf32>
    %18 = arith.truncf %17 : vector<16x64xf32> to vector<16x64xbf16>
    %c0_7 = arith.constant 0 : index
    %c0_8 = arith.constant 0 : index
    %c0_9 = arith.constant 0 : index
    %19 = vector.load %arg5[%c0_7, %c0_8, %c0_9] : memref<3x64x128xbf16, #tpu.memory_space<vmem>>, vector<1x64x128xbf16>
    %20 = vector.shape_cast %19 : vector<1x64x128xbf16> to vector<64x128xbf16>
    %cst_10 = arith.constant dense<0.000000e+00> : vector<16x128xf32>
    %21 = tpu.matmul %18, %20, %cst_10 {dimension_numbers = #tpu.dot_dimension_numbers<[1], [0], [0], [1], [0, 0, 1, 1], [], []>} : vector<16x64xbf16>, vector<64x128xbf16>, vector<16x128xf32> -> vector<16x128xf32>
    %22 = arith.truncf %9 : vector<16x64xf32> to vector<16x64xbf16>
    %c1 = arith.constant 1 : index
    %c0_11 = arith.constant 0 : index
    %c0_12 = arith.constant 0 : index
    %23 = vector.load %arg5[%c1, %c0_11, %c0_12] : memref<3x64x128xbf16, #tpu.memory_space<vmem>>, vector<1x64x128xbf16>
    %24 = vector.shape_cast %23 : vector<1x64x128xbf16> to vector<64x128xbf16>
    %cst_13 = arith.constant dense<0.000000e+00> : vector<16x128xf32>
    %25 = tpu.matmul %22, %24, %cst_13 {dimension_numbers = #tpu.dot_dimension_numbers<[1], [0], [0], [1], [0, 0, 1, 1], [], []>} : vector<16x64xbf16>, vector<64x128xbf16>, vector<16x128xf32> -> vector<16x128xf32>
    %26 = arith.addf %21, %25 : vector<16x128xf32>
    %27 = tpu.iota {dimensions = array<i32: 0>} : vector<16x16xi32>
    %28 = tpu.iota {dimensions = array<i32: 1>} : vector<16x16xi32>
    %29 = arith.subi %28, %27 : vector<16x16xi32>
    %c1_i32 = arith.constant 1 : i32
    %30 = vector.broadcast %c1_i32 : i32 to vector<16x16xi32>
    %31 = arith.cmpi eq, %29, %30 : vector<16x16xi32>
    %32 = arith.extui %31 : vector<16x16xi1> to vector<16x16xi32>
    %33 = arith.sitofp %32 : vector<16x16xi32> to vector<16x16xf32>
    %cst_14 = arith.constant dense<0.000000e+00> : vector<16x64xf32>
    %34 = tpu.matmul %33, %9, %cst_14 {dimension_numbers = #tpu.dot_dimension_numbers<[1], [0], [0], [1], [0, 0, 1, 1], [], []>} : vector<16x16xf32>, vector<16x64xf32>, vector<16x64xf32> -> vector<16x64xf32>
    %35 = arith.truncf %34 : vector<16x64xf32> to vector<16x64xbf16>
    %c2 = arith.constant 2 : index
    %c0_15 = arith.constant 0 : index
    %c0_16 = arith.constant 0 : index
    %36 = vector.load %arg5[%c2, %c0_15, %c0_16] : memref<3x64x128xbf16, #tpu.memory_space<vmem>>, vector<1x64x128xbf16>
    %37 = vector.shape_cast %36 : vector<1x64x128xbf16> to vector<64x128xbf16>
    %cst_17 = arith.constant dense<0.000000e+00> : vector<16x128xf32>
    %38 = tpu.matmul %35, %37, %cst_17 {dimension_numbers = #tpu.dot_dimension_numbers<[1], [0], [0], [1], [0, 0, 1, 1], [], []>} : vector<16x64xbf16>, vector<64x128xbf16>, vector<16x128xf32> -> vector<16x128xf32>
    %39 = arith.addf %26, %38 : vector<16x128xf32>
    %c0_18 = arith.constant 0 : index
    %c0_19 = arith.constant 0 : index
    %40 = vector.load %arg6[%c0_18, %c0_19] : memref<1x128xf32, #tpu.memory_space<vmem>>, vector<1x128xf32>
    %41 = vector.broadcast %40 : vector<1x128xf32> to vector<16x128xf32>
    %42 = arith.addf %39, %41 : vector<16x128xf32>
    %c0_20 = arith.constant 0 : index
    %c0_21 = arith.constant 0 : index
    %c0_22 = arith.constant 0 : index
    %43 = vector.load %arg2[%c0_20, %c0_21, %c0_22] : memref<1x16x64xf32, #tpu.memory_space<vmem>>, vector<1x16x64xf32>
    %44 = vector.shape_cast %43 : vector<1x16x64xf32> to vector<16x64xf32>
    %45 = arith.truncf %44 : vector<16x64xf32> to vector<16x64xbf16>
    %c0_23 = arith.constant 0 : index
    %c0_24 = arith.constant 0 : index
    %46 = vector.load %arg7[%c0_23, %c0_24] : memref<64x128xbf16, #tpu.memory_space<vmem>>, vector<64x128xbf16>
    %cst_25 = arith.constant dense<0.000000e+00> : vector<16x128xf32>
    %47 = tpu.matmul %45, %46, %cst_25 {dimension_numbers = #tpu.dot_dimension_numbers<[1], [0], [0], [1], [0, 0, 1, 1], [], []>} : vector<16x64xbf16>, vector<64x128xbf16>, vector<16x128xf32> -> vector<16x128xf32>
    %c0_26 = arith.constant 0 : index
    %c0_27 = arith.constant 0 : index
    %48 = vector.load %arg8[%c0_26, %c0_27] : memref<1x128xf32, #tpu.memory_space<vmem>>, vector<1x128xf32>
    %49 = vector.broadcast %48 : vector<1x128xf32> to vector<16x128xf32>
    %50 = arith.addf %47, %49 : vector<16x128xf32>
    %51 = arith.addf %42, %50 : vector<16x128xf32>
    %c0_28 = arith.constant 0 : index
    %c0_29 = arith.constant 0 : index
    %c0_30 = arith.constant 0 : index
    %52 = vector.load %arg9[%c0_28, %c0_29, %c0_30] : memref<1x16x128xf32, #tpu.memory_space<vmem>>, vector<1x16x128xf32>
    %53 = vector.shape_cast %52 : vector<1x16x128xf32> to vector<16x128xf32>
    %54 = vector.shape_cast %51 : vector<16x128xf32> to vector<1x16x128xf32>
    tpu.vector_store %arg9[%c0_28, %c0_29, %c0_30], %54 {strides = array<i32>} : memref<1x16x128xf32, #tpu.memory_space<vmem>>, vector<1x16x128xf32>,
    return
  }
  func.func @transform_0(%arg0: i32) -> (i32, i32, i32) {
    %c0_i32 = arith.constant 0 : i32
    %c0_i32_0 = arith.constant 0 : i32
    %c0_i32_1 = arith.constant 0 : i32
    return %arg0, %c0_i32, %c0_i32_0 : i32, i32, i32
  }
  func.func @transform_1(%arg0: i32) -> (i32, i32, i32) {
    %c0_i32 = arith.constant 0 : i32
    %c0_i32_0 = arith.constant 0 : i32
    %c0_i32_1 = arith.constant 0 : i32
    return %arg0, %c0_i32, %c0_i32_0 : i32, i32, i32
  }
  func.func @transform_2(%arg0: i32) -> (i32, i32) {
    %c0_i32 = arith.constant 0 : i32
    %c0_i32_0 = arith.constant 0 : i32
    %c0_i32_1 = arith.constant 0 : i32
    return %c0_i32, %c0_i32_0 : i32, i32
  }
  func.func @transform_3(%arg0: i32) -> (i32, i32) {
    %c0_i32 = arith.constant 0 : i32
    %c0_i32_0 = arith.constant 0 : i32
    %c0_i32_1 = arith.constant 0 : i32
    return %c0_i32, %c0_i32_0 : i32, i32
  }
  func.func @transform_4(%arg0: i32) -> (i32, i32, i32) {
    %c0_i32 = arith.constant 0 : i32
    %c0_i32_0 = arith.constant 0 : i32
    %c0_i32_1 = arith.constant 0 : i32
    %c0_i32_2 = arith.constant 0 : i32
    return %c0_i32, %c0_i32_0, %c0_i32_1 : i32, i32, i32
  }
  func.func @transform_5(%arg0: i32) -> (i32, i32) {
    %c0_i32 = arith.constant 0 : i32
    %c0_i32_0 = arith.constant 0 : i32
    %c0_i32_1 = arith.constant 0 : i32
    return %c0_i32, %c0_i32_0 : i32, i32
  }
  func.func @transform_6(%arg0: i32) -> (i32, i32) {
    %c0_i32 = arith.constant 0 : i32
    %c0_i32_0 = arith.constant 0 : i32
    %c0_i32_1 = arith.constant 0 : i32
    return %c0_i32, %c0_i32_0 : i32, i32
  }
  func.func @transform_7(%arg0: i32) -> (i32, i32) {
    %c0_i32 = arith.constant 0 : i32
    %c0_i32_0 = arith.constant 0 : i32
    %c0_i32_1 = arith.constant 0 : i32
    return %c0_i32, %c0_i32_0 : i32, i32
  }
  func.func @transform_8(%arg0: i32) -> (i32, i32, i32) {
    %c0_i32 = arith.constant 0 : i32
    %c0_i32_0 = arith.constant 0 : i32
    %c0_i32_1 = arith.constant 0 : i32
    return %arg0, %c0_i32, %c0_i32_0 : i32, i32, i32
  }
}

</mosaic_0001>

<llo_original>
// kernel: tile.53
$region0: #{tile.53}
  #allocation0 [shape = 's32[1]{0}', space=sflag, size = 0x4, scoped, tag = 'scoped memory for tile.53']
  %s0 = inlined_call_operand.vmem [shape: f32[4], index: 0, kind: input, shape index: {}]
  %s1 = inlined_call_operand.vmem [shape: f32[16,4], index: 1, kind: output, shape index: {}]
  // Predicated region
  $region2: #{tile.53} parent=0 // pred_check
    _
  $region3: #{tile.53} parent=0 // pred_check_branch
    %3 = sbr.rel (0) target = $region5
  $region4: #{tile.53} parent=0 // pred_region
    _
  $region5: #{tile.53} parent=0 // pred_fallthru
    _
  %v4 = vld [vmem:[%s0] ss:$0 sm:$0xff]
  %5 = vst [vmem:[%s1] sm:$0xff] %v4
  %s6 = scalar_lea.vmem %s1, 8
  %7 = vst [vmem:[%s6] sm:$0xff] %v4

// kernel: tile.54
$region0: #{tile.54}
  %s0 = inlined_call_operand.vmem [shape: f32[16,4], index: 0, kind: input, shape index: {}]
  %s1 = inlined_call_operand.vmem [shape: f32[1,64], index: 1, kind: output, shape index: {}]
  $region1: #{tile.54} parent=0
    #allocation0 [shape = 'u8[4096]{0}', space=vmem, size = 0x1000, scoped, tag = 'scoped mem for output reshape']
    %v2 = vld [vmem:[%s0] sm:$0x1]
    %vm3 = vcmask 31744
    %4 = vst.msk [vmem:[#allocation0] sm:$0x1] %vm3, %v2
    %s5 = scalar_lea.vmem %s0, 15
    %v6 = vld [vmem:[%s5] sm:$0x1]
    %7 = vrot.lane.b32.xlu0 %v6, 60
    %v8 = vpop.permute.xlu0 %7
    %vm9 = vcmask 523744
    %10 = vst.msk [vmem:[#allocation0] sm:$0x1] %vm9, %v8
    %s11 = scalar_lea.vmem %s0, 14
    %v12 = vld [vmem:[%s11] sm:$0x1]
    %13 = vrot.lane.b32.xlu0 %v12, 56
    %v14 = vpop.permute.xlu0 %13
    %vm15 = vcmask 490944
    %16 = vst.msk [vmem:[#allocation0] sm:$0x1] %vm15, %v14
    %s17 = scalar_lea.vmem %s0, 13
    %v18 = vld [vmem:[%s17] sm:$0x1]
    %19 = vrot.lane.b32.xlu0 %v18, 52
    %v20 = vpop.permute.xlu0 %19
    %vm21 = vcmask 458144
    %22 = vst.msk [vmem:[#allocation0] sm:$0x1] %vm21, %v20
    %s23 = scalar_lea.vmem %s0, 12
    %v24 = vld [vmem:[%s23] sm:$0x1]
    %25 = vrot.lane.b32.xlu0 %v24, 48
    %v26 = vpop.permute.xlu0 %25
    %vm27 = vcmask 425344
    %28 = vst.msk [vmem:[#allocation0] sm:$0x1] %vm27, %v26
    %s29 = scalar_lea.vmem %s0, 11
    %v30 = vld [vmem:[%s29] sm:$0x1]
    %31 = vrot.lane.b32.xlu0 %v30, 44
    %v32 = vpop.permute.xlu0 %31
    %vm33 = vcmask 392544
    %34 = vst.msk [vmem:[#allocation0] sm:$0x1] %vm33, %v32
    %s35 = scalar_lea.vmem %s0, 10
    %v36 = vld [vmem:[%s35] sm:$0x1]
    %37 = vrot.lane.b32.xlu0 %v36, 40
    %v38 = vpop.permute.xlu0 %37
    %vm39 = vcmask 359744
    %40 = vst.msk [vmem:[#allocation0] sm:$0x1] %vm39, %v38
    %s41 = scalar_lea.vmem %s0, 9
    %v42 = vld [vmem:[%s41] sm:$0x1]
    %43 = vrot.lane.b32.xlu0 %v42, 36
    %v44 = vpop.permute.xlu0 %43
    %vm45 = vcmask 326944
    %46 = vst.msk [vmem:[#allocation0] sm:$0x1] %vm45, %v44
    %s47 = scalar_lea.vmem %s0, 8
    %v48 = vld [vmem:[%s47] sm:$0x1]
    %49 = vrot.lane.b32.xlu0 %v48, 32
    %v50 = vpop.permute.xlu0 %49
    %vm51 = vcmask 294144
    %52 = vst.msk [vmem:[#allocation0] sm:$0x1] %vm51, %v50
    %s53 = scalar_lea.vmem %s0, 7
    %v54 = vld [vmem:[%s53] sm:$0x1]
    %55 = vrot.lane.b32.xlu0 %v54, 28
    %v56 = vpop.permute.xlu0 %55
    %vm57 = vcmask 261344
    %58 = vst.msk [vmem:[#allocation0] sm:$0x1] %vm57, %v56
    %s59 = scalar_lea.vmem %s0, 6
    %v60 = vld [vmem:[%s59] sm:$0x1]
    %61 = vrot.lane.b32.xlu0 %v60, 24
    %v62 = vpop.permute.xlu0 %61
    %vm63 = vcmask 228544
    %64 = vst.msk [vmem:[#allocation0] sm:$0x1] %vm63, %v62
    %s65 = scalar_lea.vmem %s0, 5
    %v66 = vld [vmem:[%s65] sm:$0x1]
    %67 = vrot.lane.b32.xlu0 %v66, 20
    %v68 = vpop.permute.xlu0 %67
    %vm69 = vcmask 195744
    %70 = vst.msk [vmem:[#allocation0] sm:$0x1] %vm69, %v68
    %s71 = scalar_lea.vmem %s0, 4
    %v72 = vld [vmem:[%s71] sm:$0x1]
    %73 = vrot.lane.b32.xlu0 %v72, 16
    %v74 = vpop.permute.xlu0 %73
    %vm75 = vcmask 162944
    %76 = vst.msk [vmem:[#allocation0] sm:$0x1] %vm75, %v74
    %s77 = scalar_lea.vmem %s0, 3
    %v78 = vld [vmem:[%s77] sm:$0x1]
    %79 = vrot.lane.b32.xlu0 %v78, 12
    %v80 = vpop.permute.xlu0 %79
    %vm81 = vcmask 130144
    %82 = vst.msk [vmem:[#allocation0] sm:$0x1] %vm81, %v80
    %s83 = scalar_lea.vmem %s0, 2
    %v84 = vld [vmem:[%s83] sm:$0x1]
    %85 = vrot.lane.b32.xlu0 %v84, 8
    %v86 = vpop.permute.xlu0 %85
    %vm87 = vcmask 97344
    %88 = vst.msk [vmem:[#allocation0] sm:$0x1] %vm87, %v86
    %s89 = scalar_lea.vmem %s0, 1
    %v90 = vld [vmem:[%s89] sm:$0x1]
    %91 = vrot.lane.b32.xlu0 %v90, 4
    %v92 = vpop.permute.xlu0 %91
    %vm93 = vcmask 64544
    %94 = vst.msk [vmem:[#allocation0] sm:$0x1] %vm93, %v92
    %s96 = sshllo.u32 0, 1
    %v98 = vld [vmem:[#allocation0] sm:%s96]
    %s99 = sshllo.u32 0, 1
    %100 = vst [vmem:[%s1] sm:%s99] %v98

// kernel: residual_block.2
$region0: #{residual_block.2}
  #allocation0 [shape = 'u32[]', space=smem, size = 0x4, offset = 0x4, fixed_abs, tag = 'smem constant byte address 0x4 - core index']
  #allocation1 [shape = 'u32[144,128]{1,0:T(1,128)}', space=vmem, size = 0x12000, scoped, tag = 'internal scratch']
  %s0 = inlined_call_operand.vmem [shape: f32[2,16,64], index: 0, kind: input, shape index: {}]
  %s1 = inlined_call_operand.vmem [shape: f32[1,64], index: 1, kind: input, shape index: {}]
  %s2 = inlined_call_operand.vmem [shape: f32[1,64], index: 2, kind: input, shape index: {}]
  %s3 = inlined_call_operand.vmem [shape: bf16[3,64,64], index: 3, kind: input, shape index: {}]
  %s4 = inlined_call_operand.vmem [shape: f32[1,64], index: 4, kind: input, shape index: {}]
  %s5 = inlined_call_operand.vmem [shape: f32[2,16,64], index: 5, kind: output, shape index: {}]
  %s6 = sld [smem:[#allocation0]]
  $region53: #{residual_block.2} parent=0
    _
  %s8 = ssub.s32 1, %s6
  %s9 = scalar_select 0, %s8, %s6
  loop: start=0, step=1, limit=4
  $region2: #{residual_block.2} parent=0 // loop_pre_header
    _
  $region3: #{residual_block.2} parent=0 // loop_header
    %s11 = sphi 0, %s15
    %p12 = scmp.ge.s32.totalorder %s11, 4
    %s21 = sphi 0, %s23
    %s24 = sphi 0, %s21
    %s25 = sphi 0, %s24
    %s41 = sphi 0, %s25
    %s45 = sphi 0, %s45
    %s47 = sphi 0, %s45
    %s48 = sphi 0, %s47
    %s62 = sphi 0, %s48
    %s66 = sphi 0, %s66
    %s68 = sphi 0, %s66
    %s69 = sphi 0, %s68
    %s83 = sphi 0, %s69
    %s87 = sphi 0, %s87
    %s89 = sphi 0, %s87
    %s90 = sphi 0, %s89
    %s104 = sphi 0, %s90
    %s108 = sphi 0, %s108
    %s110 = sphi 0, %s108
    %s111 = sphi 0, %s110
    %s125 = sphi 0, %s111
    %s131 = sphi 0, %s133
    %s134 = sphi 0, %s131
    %s135 = sphi 0, %s134
    %s151 = sphi 0, %s135
  $region4: #{residual_block.2} parent=0 // loop_header_branch
    %14 = sbr.rel (%p12) target = $region8
  $region5: #{residual_block.2} parent=0 // loop_body
    %s16 = ssub.s32 %s11, 1
    %s17 = ssub.s32 %s11, 2
    %s18 = sadd.s32 %s11, 1
    %s19 = ssub.s32 %s11, %s18
    %p20 = scmp.eq.s32.totalorder %s19, 0
    %s22 = sadd.s32 %s21, 1
    %s23 = scalar_select %p20, %s21, %s22
    %p26 = pneg %p20
    %p27 = scmp.eq.s32.totalorder %s11, 1
    %p28 = por %p26, %p27
    %p29 = scmp.ne.s32.totalorder %s21, %s24
    %p30 = scmp.eq.s32.totalorder %s11, 0
    %p31 = por %p29, %p30
    %p32 = scmp.ne.s32.totalorder %s21, %s24
    %p33 = scmp.eq.s32.totalorder %s16, 1
    %p34 = por %p32, %p33
    %p35 = scmp.ne.s32.totalorder %s24, %s25
    %p36 = scmp.eq.s32.totalorder %s16, 0
    %p37 = por %p35, %p36
    %p38 = scmp.ne.s32.totalorder %s24, %s25
    %p39 = scmp.eq.s32.totalorder %s17, 1
    %p40 = por %p38, %p39
    %p42 = scmp.ne.s32.totalorder %s25, %s41
    %p43 = scmp.eq.s32.totalorder %s17, 0
    %p44 = por %p42, %p43
    %s46 = sadd.s32 %s45, 1
    %p49 = scmp.eq.s32.totalorder %s11, 1
    %p50 = scmp.ne.s32.totalorder %s45, %s47
    %p51 = scmp.eq.s32.totalorder %s11, 0
    %p52 = por %p50, %p51
    %p53 = scmp.ne.s32.totalorder %s45, %s47
    %p54 = scmp.eq.s32.totalorder %s16, 1
    %p55 = por %p53, %p54
    %p56 = scmp.ne.s32.totalorder %s47, %s48
    %p57 = scmp.eq.s32.totalorder %s16, 0
    %p58 = por %p56, %p57
    %p59 = scmp.ne.s32.totalorder %s47, %s48
    %p60 = scmp.eq.s32.totalorder %s17, 1
    %p61 = por %p59, %p60
    %p63 = scmp.ne.s32.totalorder %s48, %s62
    %p64 = scmp.eq.s32.totalorder %s17, 0
    %p65 = por %p63, %p64
    %s67 = sadd.s32 %s66, 1
    %p70 = scmp.eq.s32.totalorder %s11, 1
    %p71 = scmp.ne.s32.totalorder %s66, %s68
    %p72 = scmp.eq.s32.totalorder %s11, 0
    %p73 = por %p71, %p72
    %p74 = scmp.ne.s32.totalorder %s66, %s68
    %p75 = scmp.eq.s32.totalorder %s16, 1
    %p76 = por %p74, %p75
    %p77 = scmp.ne.s32.totalorder %s68, %s69
    %p78 = scmp.eq.s32.totalorder %s16, 0
    %p79 = por %p77, %p78
    %p80 = scmp.ne.s32.totalorder %s68, %s69
    %p81 = scmp.eq.s32.totalorder %s17, 1
    %p82 = por %p80, %p81
    %p84 = scmp.ne.s32.totalorder %s69, %s83
    %p85 = scmp.eq.s32.totalorder %s17, 0
    %p86 = por %p84, %p85
    %s88 = sadd.s32 %s87, 1
    %p91 = scmp.eq.s32.totalorder %s11, 1
    %p92 = scmp.ne.s32.totalorder %s87, %s89
    %p93 = scmp.eq.s32.totalorder %s11, 0
    %p94 = por %p92, %p93
    %p95 = scmp.ne.s32.totalorder %s87, %s89
    %p96 = scmp.eq.s32.totalorder %s16, 1
    %p97 = por %p95, %p96
    %p98 = scmp.ne.s32.totalorder %s89, %s90
    %p99 = scmp.eq.s32.totalorder %s16, 0
    %p100 = por %p98, %p99
    %p101 = scmp.ne.s32.totalorder %s89, %s90
    %p102 = scmp.eq.s32.totalorder %s17, 1
    %p103 = por %p101, %p102
    %p105 = scmp.ne.s32.totalorder %s90, %s104
    %p106 = scmp.eq.s32.totalorder %s17, 0
    %p107 = por %p105, %p106
    %s109 = sadd.s32 %s108, 1
    %p112 = scmp.eq.s32.totalorder %s11, 1
    %p113 = scmp.ne.s32.totalorder %s108, %s110
    %p114 = scmp.eq.s32.totalorder %s11, 0
    %p115 = por %p113, %p114
    %p116 = scmp.ne.s32.totalorder %s108, %s110
    %p117 = scmp.eq.s32.totalorder %s16, 1
    %p118 = por %p116, %p117
    %p119 = scmp.ne.s32.totalorder %s110, %s111
    %p120 = scmp.eq.s32.totalorder %s16, 0
    %p121 = por %p119, %p120
    %p122 = scmp.ne.s32.totalorder %s110, %s111
    %p123 = scmp.eq.s32.totalorder %s17, 1
    %p124 = por %p122, %p123
    %p126 = scmp.ne.s32.totalorder %s111, %s125
    %p127 = scmp.eq.s32.totalorder %s17, 0
    %p128 = por %p126, %p127
    %s129 = ssub.s32 %s11, %s18
    %p130 = scmp.eq.s32.totalorder %s129, 0
    %s132 = sadd.s32 %s131, 1
    %s133 = scalar_select %p130, %s131, %s132
    %p136 = pneg %p130
    %p137 = scmp.eq.s32.totalorder %s11, 1
    %p138 = por %p136, %p137
    %p139 = scmp.ne.s32.totalorder %s131, %s134
    %p140 = scmp.eq.s32.totalorder %s11, 0
    %p141 = por %p139, %p140
    %p142 = scmp.ne.s32.totalorder %s131, %s134
    %p143 = scmp.eq.s32.totalorder %s16, 1
    %p144 = por %p142, %p143
    %p145 = scmp.ne.s32.totalorder %s134, %s135
    %p146 = scmp.eq.s32.totalorder %s16, 0
    %p147 = por %p145, %p146
    %p148 = scmp.ne.s32.totalorder %s134, %s135
    %p149 = scmp.eq.s32.totalorder %s17, 1
    %p150 = por %p148, %p149
    %p152 = scmp.ne.s32.totalorder %s135, %s151
    %p153 = scmp.eq.s32.totalorder %s17, 0
    %p154 = por %p152, %p153
    %p155 = scmp.le.s32.totalorder 1, %s11
    %p156 = scmp.lt.s32.totalorder %s11, 3
    %p157 = pnand %p155, %p156
    %p158 = pneg %p157
    // Predicated region
    $region9: #{residual_block.2} parent=5 // pred_check
      _
    $region10: #{residual_block.2} parent=5 // pred_check_branch
      %160 = sbr.rel (%p157) target = $region12
    $region11: #{residual_block.2} parent=5 // pred_region
      %s161 = ssub.s32 %s11, 1
      // Predicated region
      $region13: #{residual_block.2} parent=11 // pred_check
        %p162 = pneg %p58
      $region14: #{residual_block.2} parent=11 // pred_check_branch
        %164 = sbr.rel (%p162) target = $region16
      $region15: #{residual_block.2} parent=11 // pred_region
        _
      $region16: #{residual_block.2} parent=11 // pred_fallthru
        _
      // Predicated region
      $region17: #{residual_block.2} parent=11 // pred_check
        %p165 = pneg %p79
      $region18: #{residual_block.2} parent=11 // pred_check_branch
        %167 = sbr.rel (%p165) target = $region20
      $region19: #{residual_block.2} parent=11 // pred_region
        _
      $region20: #{residual_block.2} parent=11 // pred_fallthru
        _
      // Predicated region
      $region21: #{residual_block.2} parent=11 // pred_check
        %p168 = pneg %p100
      $region22: #{residual_block.2} parent=11 // pred_check_branch
        %170 = sbr.rel (%p168) target = $region24
      $region23: #{residual_block.2} parent=11 // pred_region
        _
      $region24: #{residual_block.2} parent=11 // pred_fallthru
        _
      // Predicated region
      $region25: #{residual_block.2} parent=11 // pred_check
        %p171 = pneg %p121
      $region26: #{residual_block.2} parent=11 // pred_check_branch
        %173 = sbr.rel (%p171) target = $region28
      $region27: #{residual_block.2} parent=11 // pred_region
        _
      $region28: #{residual_block.2} parent=11 // pred_fallthru
        _
    $region12: #{residual_block.2} parent=5 // pred_fallthru
      _
    %p174 = scmp.lt.s32.totalorder %s11, 2
    // Predicated region
    $region29: #{residual_block.2} parent=5 // pred_check
      %p175 = pneg %p174
    $region30: #{residual_block.2} parent=5 // pred_check_branch
      %177 = sbr.rel (%p175) target = $region32
    $region31: #{residual_block.2} parent=5 // pred_region
      // Predicated region
      $region33: #{residual_block.2} parent=31 // pred_check
        %p178 = pneg %p31
      $region34: #{residual_block.2} parent=31 // pred_check_branch
        %180 = sbr.rel (%p178) target = $region36
      $region35: #{residual_block.2} parent=31 // pred_region
        %p181 = scmp.lt.s32.totalorder %s11, 1
        %s182 = scalar_select %p181, %s11, 1
        %s183 = smul.addr %s182, 2
        %s184 = smul.addr %s183, 8
        %s185 = scalar_lea.vmem %s0, %s184
      $region36: #{residual_block.2} parent=31 // pred_fallthru
        _
    $region32: #{residual_block.2} parent=5 // pred_fallthru
      _
    %p186 = scmp.le.s32.totalorder 1, %s11
    %p187 = scmp.lt.s32.totalorder %s11, 3
    %p188 = pnand %p186, %p187
    %p189 = pneg %p188
    // Predicated region
    $region37: #{residual_block.2} parent=5 // pred_check
      _
    $region38: #{residual_block.2} parent=5 // pred_check_branch
      %191 = sbr.rel (%p188) target = $region40
    $region39: #{residual_block.2} parent=5 // pred_region
      %s192 = ssub.s32 %s11, 1
      %p193 = scmp.lt.s32.totalorder %s16, 1
      %s194 = scalar_select %p193, %s16, 1
      %s195 = smul.addr %s194, 2
      %s196 = smul.addr %s195, 8
      %s197 = scalar_lea.vmem %s0, %s196
      %p198 = pneg %p37
      %p199 = pneg %p34
      %p200 = pneg %p58
      %p201 = pneg %p55
      %p202 = pneg %p79
      %p203 = pneg %p76
      %p204 = pneg %p100
      %p205 = pneg %p97
      %p206 = pneg %p121
      %p207 = pneg %p118
      %p208 = pneg %p147
      %p209 = pneg %p144
      %p210 = scmp.lt.s32.totalorder %s16, 1
      %s211 = scalar_select %p210, %s16, 1
      %s212 = smul.addr %s211, 2
      %s213 = smul.addr %s212, 8
      %s214 = scalar_lea.vmem %s5, %s213
      %p215 = scmp.lt.s32.totalorder %s16, 1
      %s216 = scalar_select %p215, %s16, 1
      %s217 = smul.addr %s216, 2
      %s218 = smul.addr %s217, 8
      %s219 = scalar_lea.vmem %s0, %s218
      %p220 = scmp.lt.s32.totalorder %s16, 1
      %s221 = scalar_select %p220, %s16, 1
      %s222 = smul.addr %s221, 2
      %s223 = smul.addr %s222, 8
      %s224 = scalar_lea.vmem %s5, %s223
      %v226 = vld [vmem:[%s219] sm:$0xff]
      %v227 = vld [vmem:[%s219 + $0x8] sm:$0xff]
      %v228 = vld [vmem:[%s1] sm:$0x1]
      %v230 = vlaneseq
      %v231 = vshrl.u32 %v230, 7
      %v232 = vsub.s32 0, %v231
      %v233 = vrot.slane %v228, %v232
      %v235 = vmul.f32 %v226, %v233
      %v236 = vmul.f32 %v227, %v233
      %v237 = vld [vmem:[%s2] sm:$0x1]
      %v239 = vlaneseq
      %v240 = vshrl.u32 %v239, 7
      %v241 = vsub.s32 0, %v240
      %v242 = vrot.slane %v237, %v241
      %v244 = vadd.f32 %v235, %v242
      %v245 = vadd.f32 %v236, %v242
      %v246 = vmax.f32 %v244, 0.0
      %v247 = vmax.f32 %v245, 0.0
      %v248 = vlaneseq
      %v249 = vshrl.u32 %v248, 7
      %v250 = vadd.s32 %v249, 8
      %v251 = vlaneseq
      %v252 = vand.u32 %v251, 127
      %v253 = vsub.s32 %v252, %v249
      %v254 = vsub.s32 %v252, %v250
      %vm255 = vcmp.eq.s32.totalorder %v253, 4294967295
      %vm256 = vcmp.eq.s32.totalorder %v254, 4294967295
      %v257 = vsel %vm255, 1, 0
      %v258 = vsel %vm256, 1, 0
      %v259 = vcvt.s32.f32 %v257
      %v260 = vcvt.s32.f32 %v258
      %vm261 = vcmask 130048
      %v263 = vsel %vm261, %v259, 0
      %v266 = vsel %vm261, %v260, 0
      %268 = vmatprep.subr.mxu0 0.0
      %269 = vmatpush1.msra.mxu0 %v246
      %270 = vmatprep.subr.mxu0 0.0
      %271 = vmatpush1.msra.mxu0 %v247
      %272 = vmatprep.subr.mxu0 0.0
      %273 = vmatpush1.msra.mxu0 0.0
      %274 = vmatprep.subr.mxu0 0.0
      %275 = vmatpush1.msra.mxu0 0.0
      %276 = vmatprep.subr.mxu0 0.0
      %277 = vmatpush1.msra.mxu0 0.0
      %278 = vmatprep.subr.mxu0 0.0
      %279 = vmatpush1.msra.mxu0 0.0
      %280 = vmatprep.subr.mxu0 0.0
      %281 = vmatpush1.msra.mxu0 0.0
      %282 = vmatprep.subr.mxu0 0.0
      %283 = vmatpush1.msra.mxu0 0.0
      %284 = vmatprep.subr.mxu0 0.0
      %285 = vmatpush1.msra.mxu0 0.0
      %286 = vmatprep.subr.mxu0 0.0
      %287 = vmatpush1.msra.mxu0 0.0
      %288 = vmatprep.subr.mxu0 0.0
      %289 = vmatpush1.msra.mxu0 0.0
      %290 = vmatprep.subr.mxu0 0.0
      %291 = vmatpush1.msra.mxu0 0.0
      %292 = vmatprep.subr.mxu0 0.0
      %293 = vmatpush1.msra.mxu0 0.0
      %294 = vmatprep.subr.mxu0 0.0
      %295 = vmatpush1.msra.mxu0 0.0
      %296 = vmatprep.subr.mxu0 0.0
      %297 = vmatpush1.msra.mxu0 0.0
      %298 = vmatprep.subr.mxu0 0.0
      %299 = vmatpush1.msra.mxu0 0.0
      %300 = vmatprep.subr.mxu0 0.0
      %301 = vmatpush1.msra.mxu0 0.0
      %302 = vmatprep.subr.mxu0 0.0
      %303 = vmatpush1.msra.mxu0 0.0
      %304 = vmatprep.subr.mxu0 0.0
      %305 = vmatpush1.msra.mxu0 0.0
      %306 = vmatprep.subr.mxu0 0.0
      %307 = vmatpush1.msra.mxu0 0.0
      %308 = vmatprep.subr.mxu0 0.0
      %309 = vmatpush1.msra.mxu0 0.0
      %310 = vmatprep.subr.mxu0 0.0
      %311 = vmatpush1.msra.mxu0 0.0
      %312 = vmatprep.subr.mxu0 0.0
      %313 = vmatpush1.msra.mxu0 0.0
      %314 = vmatprep.subr.mxu0 0.0
      %315 = vmatpush1.msra.mxu0 0.0
      %316 = vmatprep.subr.mxu0 0.0
      %317 = vmatpush1.msra.mxu0 0.0
      %318 = vmatprep.subr.mxu0 0.0
      %319 = vmatpush1.msra.mxu0 0.0
      %320 = vmatprep.subr.mxu0 0.0
      %321 = vmatpush1.msra.mxu0 0.0
      %322 = vmatprep.subr.mxu0 0.0
      %323 = vmatpush1.msra.mxu0 0.0
      %324 = vmatprep.subr.mxu0 0.0
      %325 = vmatpush1.msra.mxu0 0.0
      %326 = vmatprep.subr.mxu0 0.0
      %327 = vmatpush1.msra.mxu0 0.0
      %328 = vmatprep.subr.mxu0 0.0
      %329 = vmatpush1.msra.mxu0 0.0
      %330 = vmatprep.subr.mxu0 0.0
      %331 = vmatpush1.msra.mxu0 0.0
      %332 = vmatprep.mubr.f32.mxu0 0.0
      %333 = vmatmul.mubr.f32.gmra.mrb[0].mxu0 %v263
      %v334 = vpop.f32.mrb[0].mxu0
      %v335 = vadd.f32 0.0, %v334
      %v336 = vpop.f32.mrb[0].mxu0
      %337 = vmatprep.mubr.f32.mxu0 0.0
      %338 = vmatmul.mubr.f32.gmra.mrb[0].mxu0 %v266
      %v339 = vpop.f32.mrb[0].mxu0
      %v340 = vadd.f32 0.0, %v339
      %v341 = vpop.f32.mrb[0].mxu0
      %342 = vdwg.mxu0
      %v343 = vpack.c.bf16 %v340, %v335
      %v344 = vld [vmem:[%s3] sm:$0xf]
      %v345 = vld [vmem:[%s3 + $0x4] sm:$0xf]
      %v346 = vld [vmem:[%s3 + $0x8] sm:$0xf]
      %v347 = vld [vmem:[%s3 + $0xc] sm:$0xf]
      %v348 = vld [vmem:[%s3 + $0x10] sm:$0xf]
      %v349 = vld [vmem:[%s3 + $0x14] sm:$0xf]
      %v350 = vld [vmem:[%s3 + $0x18] sm:$0xf]
      %v351 = vld [vmem:[%s3 + $0x1c] sm:$0xf]
      %v352 = vpack.c.bf16 %v247, %v246
      %s353 = scalar_lea.vmem %s3, 32
      %v354 = vld [vmem:[%s353] sm:$0xf]
      %v355 = vld [vmem:[%s353 + $0x4] sm:$0xf]
      %v356 = vld [vmem:[%s353 + $0x8] sm:$0xf]
      %v357 = vld [vmem:[%s353 + $0xc] sm:$0xf]
      %v358 = vld [vmem:[%s353 + $0x10] sm:$0xf]
      %v359 = vld [vmem:[%s353 + $0x14] sm:$0xf]
      %v360 = vld [vmem:[%s353 + $0x18] sm:$0xf]
      %v361 = vld [vmem:[%s353 + $0x1c] sm:$0xf]
      %v370 = vunpack.c.l.b16 %v354
      %v371 = vunpack.c.l.b16 %v355
      %v372 = vunpack.c.l.b16 %v356
      %v373 = vunpack.c.l.b16 %v357
      %v374 = vunpack.c.l.b16 %v358
      %v375 = vunpack.c.l.b16 %v359
      %v376 = vunpack.c.l.b16 %v360
      %v377 = vunpack.c.l.b16 %v361
      %v378 = vpack.c.b16 %v371, %v370
      %v379 = vpack.c.b16 %v373, %v372
      %v380 = vpack.c.b16 %v375, %v374
      %v381 = vpack.c.b16 %v377, %v376
      %vm386 = vcmask 523264
      %v388 = vsel %vm386, %v352, 0
      %390 = vmatprep.subr.bf16.mxu0 0
      %391 = vmatpush1.bf16.msra.mxu0 %v378
      %392 = vmatprep.subr.bf16.mxu0 0
      %393 = vmatpush1.bf16.msra.mxu0 %v379
      %394 = vmatprep.subr.bf16.mxu0 0
      %395 = vmatpush1.bf16.msra.mxu0 %v380
      %396 = vmatprep.subr.bf16.mxu0 0
      %397 = vmatpush1.bf16.msra.mxu0 %v381
      %398 = vmatprep.subr.bf16.mxu0 0
      %399 = vmatpush1.bf16.msra.mxu0 0
      %400 = vmatprep.subr.bf16.mxu0 0
      %401 = vmatpush1.bf16.msra.mxu0 0
      %402 = vmatprep.subr.bf16.mxu0 0
      %403 = vmatpush1.bf16.msra.mxu0 0
      %404 = vmatprep.subr.bf16.mxu0 0
      %405 = vmatpush1.bf16.msra.mxu0 0
      %406 = vmatprep.subr.bf16.mxu0 0
      %407 = vmatpush1.bf16.msra.mxu0 0
      %408 = vmatprep.subr.bf16.mxu0 0
      %409 = vmatpush1.bf16.msra.mxu0 0
      %410 = vmatprep.subr.bf16.mxu0 0
      %411 = vmatpush1.bf16.msra.mxu0 0
      %412 = vmatprep.subr.bf16.mxu0 0
      %413 = vmatpush1.bf16.msra.mxu0 0
      %414 = vmatprep.subr.bf16.mxu0 0
      %415 = vmatpush1.bf16.msra.mxu0 0
      %416 = vmatprep.subr.bf16.mxu0 0
      %417 = vmatpush1.bf16.msra.mxu0 0
      %418 = vmatprep.subr.bf16.mxu0 0
      %419 = vmatpush1.bf16.msra.mxu0 0
      %420 = vmatprep.subr.bf16.mxu0 0
      %421 = vmatpush1.bf16.msra.mxu0 0
      %422 = vmatprep.mubr.bf16.mxu0 0
      %423 = vmatmul.mubr.bf16.gmra.mrb[0].mxu0 %v388
      %v424 = vpop.f32.mrb[0].mxu0
      %v425 = vadd.f32 0.0, %v424
      %v426 = vpop.f32.mrb[0].mxu0
      %v427 = vpop.f32.mrb[0].mxu0
      %v428 = vadd.f32 0.0, %v427
      %v429 = vpop.f32.mrb[0].mxu0
      %430 = vdwg.mxu0
      %v439 = vunpack.c.l.b16 %v344
      %v440 = vunpack.c.l.b16 %v345
      %v441 = vunpack.c.l.b16 %v346
      %v442 = vunpack.c.l.b16 %v347
      %v443 = vunpack.c.l.b16 %v348
      %v444 = vunpack.c.l.b16 %v349
      %v445 = vunpack.c.l.b16 %v350
      %v446 = vunpack.c.l.b16 %v351
      %v447 = vpack.c.b16 %v440, %v439
      %v448 = vpack.c.b16 %v442, %v441
      %v449 = vpack.c.b16 %v444, %v443
      %v450 = vpack.c.b16 %v446, %v445
      %v456 = vsel %vm386, %v343, 0
      %458 = vmatprep.subr.bf16.mxu0 0
      %459 = vmatpush1.bf16.msra.mxu0 %v447
      %460 = vmatprep.subr.bf16.mxu0 0
      %461 = vmatpush1.bf16.msra.mxu0 %v448
      %462 = vmatprep.subr.bf16.mxu0 0
      %463 = vmatpush1.bf16.msra.mxu0 %v449
      %464 = vmatprep.subr.bf16.mxu0 0
      %465 = vmatpush1.bf16.msra.mxu0 %v450
      %466 = vmatprep.subr.bf16.mxu0 0
      %467 = vmatpush1.bf16.msra.mxu0 0
      %468 = vmatprep.subr.bf16.mxu0 0
      %469 = vmatpush1.bf16.msra.mxu0 0
      %470 = vmatprep.subr.bf16.mxu0 0
      %471 = vmatpush1.bf16.msra.mxu0 0
      %472 = vmatprep.subr.bf16.mxu0 0
      %473 = vmatpush1.bf16.msra.mxu0 0
      %474 = vmatprep.subr.bf16.mxu0 0
      %475 = vmatpush1.bf16.msra.mxu0 0
      %476 = vmatprep.subr.bf16.mxu0 0
      %477 = vmatpush1.bf16.msra.mxu0 0
      %478 = vmatprep.subr.bf16.mxu0 0
      %479 = vmatpush1.bf16.msra.mxu0 0
      %480 = vmatprep.subr.bf16.mxu0 0
      %481 = vmatpush1.bf16.msra.mxu0 0
      %482 = vmatprep.subr.bf16.mxu0 0
      %483 = vmatpush1.bf16.msra.mxu0 0
      %484 = vmatprep.subr.bf16.mxu0 0
      %485 = vmatpush1.bf16.msra.mxu0 0
      %486 = vmatprep.subr.bf16.mxu0 0
      %487 = vmatpush1.bf16.msra.mxu0 0
      %488 = vmatprep.subr.bf16.mxu0 0
      %489 = vmatpush1.bf16.msra.mxu0 0
      %490 = vmatprep.mubr.bf16.mxu0 0
      %491 = vmatmul.mubr.bf16.gmra.mrb[0].mxu0 %v456
      %v492 = vpop.f32.mrb[0].mxu0
      %v493 = vadd.f32 %v425, %v492
      %v494 = vpop.f32.mrb[0].mxu0
      %v495 = vpop.f32.mrb[0].mxu0
      %v496 = vadd.f32 %v428, %v495
      %v497 = vpop.f32.mrb[0].mxu0
      %498 = vdwg.mxu0
      %vm499 = vcmp.eq.s32.totalorder %v253, 1
      %vm500 = vcmp.eq.s32.totalorder %v254, 1
      %v501 = vsel %vm499, 1, 0
      %v502 = vsel %vm500, 1, 0
      %v503 = vcvt.s32.f32 %v501
      %v504 = vcvt.s32.f32 %v502
      %v506 = vsel %vm261, %v503, 0
      %v509 = vsel %vm261, %v504, 0
      %511 = vmatprep.subr.mxu0 0.0
      %512 = vmatpush1.msra.mxu0 %v246
      %513 = vmatprep.subr.mxu0 0.0
      %514 = vmatpush1.msra.mxu0 %v247
      %515 = vmatprep.subr.mxu0 0.0
      %516 = vmatpush1.msra.mxu0 0.0
      %517 = vmatprep.subr.mxu0 0.0
      %518 = vmatpush1.msra.mxu0 0.0
      %519 = vmatprep.subr.mxu0 0.0
      %520 = vmatpush1.msra.mxu0 0.0
      %521 = vmatprep.subr.mxu0 0.0
      %522 = vmatpush1.msra.mxu0 0.0
      %523 = vmatprep.subr.mxu0 0.0
      %524 = vmatpush1.msra.mxu0 0.0
      %525 = vmatprep.subr.mxu0 0.0
      %526 = vmatpush1.msra.mxu0 0.0
      %527 = vmatprep.subr.mxu0 0.0
      %528 = vmatpush1.msra.mxu0 0.0
      %529 = vmatprep.subr.mxu0 0.0
      %530 = vmatpush1.msra.mxu0 0.0
      %531 = vmatprep.subr.mxu0 0.0
      %532 = vmatpush1.msra.mxu0 0.0
      %533 = vmatprep.subr.mxu0 0.0
      %534 = vmatpush1.msra.mxu0 0.0
      %535 = vmatprep.subr.mxu0 0.0
      %536 = vmatpush1.msra.mxu0 0.0
      %537 = vmatprep.subr.mxu0 0.0
      %538 = vmatpush1.msra.mxu0 0.0
      %539 = vmatprep.subr.mxu0 0.0
      %540 = vmatpush1.msra.mxu0 0.0
      %541 = vmatprep.subr.mxu0 0.0
      %542 = vmatpush1.msra.mxu0 0.0
      %543 = vmatprep.subr.mxu0 0.0
      %544 = vmatpush1.msra.mxu0 0.0
      %545 = vmatprep.subr.mxu0 0.0
      %546 = vmatpush1.msra.mxu0 0.0
      %547 = vmatprep.subr.mxu0 0.0
      %548 = vmatpush1.msra.mxu0 0.0
      %549 = vmatprep.subr.mxu0 0.0
      %550 = vmatpush1.msra.mxu0 0.0
      %551 = vmatprep.subr.mxu0 0.0
      %552 = vmatpush1.msra.mxu0 0.0
      %553 = vmatprep.subr.mxu0 0.0
      %554 = vmatpush1.msra.mxu0 0.0
      %555 = vmatprep.subr.mxu0 0.0
      %556 = vmatpush1.msra.mxu0 0.0
      %557 = vmatprep.subr.mxu0 0.0
      %558 = vmatpush1.msra.mxu0 0.0
      %559 = vmatprep.subr.mxu0 0.0
      %560 = vmatpush1.msra.mxu0 0.0
      %561 = vmatprep.subr.mxu0 0.0
      %562 = vmatpush1.msra.mxu0 0.0
      %563 = vmatprep.subr.mxu0 0.0
      %564 = vmatpush1.msra.mxu0 0.0
      %565 = vmatprep.subr.mxu0 0.0
      %566 = vmatpush1.msra.mxu0 0.0
      %567 = vmatprep.subr.mxu0 0.0
      %568 = vmatpush1.msra.mxu0 0.0
      %569 = vmatprep.subr.mxu0 0.0
      %570 = vmatpush1.msra.mxu0 0.0
      %571 = vmatprep.subr.mxu0 0.0
      %572 = vmatpush1.msra.mxu0 0.0
      %573 = vmatprep.subr.mxu0 0.0
      %574 = vmatpush1.msra.mxu0 0.0
      %575 = vmatprep.mubr.f32.mxu0 0.0
      %576 = vmatmul.mubr.f32.gmra.mrb[0].mxu0 %v506
      %v577 = vpop.f32.mrb[0].mxu0
      %v578 = vadd.f32 0.0, %v577
      %v579 = vpop.f32.mrb[0].mxu0
      %580 = vmatprep.mubr.f32.mxu0 0.0
      %581 = vmatmul.mubr.f32.gmra.mrb[0].mxu0 %v509
      %v582 = vpop.f32.mrb[0].mxu0
      %v583 = vadd.f32 0.0, %v582
      %v584 = vpop.f32.mrb[0].mxu0
      %585 = vdwg.mxu0
      %v586 = vpack.c.bf16 %v583, %v578
      %s587 = scalar_lea.vmem %s3, 64
      %v588 = vld [vmem:[%s587] sm:$0xf]
      %v589 = vld [vmem:[%s587 + $0x4] sm:$0xf]
      %v590 = vld [vmem:[%s587 + $0x8] sm:$0xf]
      %v591 = vld [vmem:[%s587 + $0xc] sm:$0xf]
      %v592 = vld [vmem:[%s587 + $0x10] sm:$0xf]
      %v593 = vld [vmem:[%s587 + $0x14] sm:$0xf]
      %v594 = vld [vmem:[%s587 + $0x18] sm:$0xf]
      %v595 = vld [vmem:[%s587 + $0x1c] sm:$0xf]
      %v604 = vunpack.c.l.b16 %v588
      %v605 = vunpack.c.l.b16 %v589
      %v606 = vunpack.c.l.b16 %v590
      %v607 = vunpack.c.l.b16 %v591
      %v608 = vunpack.c.l.b16 %v592
      %v609 = vunpack.c.l.b16 %v593
      %v610 = vunpack.c.l.b16 %v594
      %v611 = vunpack.c.l.b16 %v595
      %v612 = vpack.c.b16 %v605, %v604
      %v613 = vpack.c.b16 %v607, %v606
      %v614 = vpack.c.b16 %v609, %v608
      %v615 = vpack.c.b16 %v611, %v610
      %v621 = vsel %vm386, %v586, 0
      %623 = vmatprep.subr.bf16.mxu0 0
      %624 = vmatpush1.bf16.msra.mxu0 %v612
      %625 = vmatprep.subr.bf16.mxu0 0
      %626 = vmatpush1.bf16.msra.mxu0 %v613
      %627 = vmatprep.subr.bf16.mxu0 0
      %628 = vmatpush1.bf16.msra.mxu0 %v614
      %629 = vmatprep.subr.bf16.mxu0 0
      %630 = vmatpush1.bf16.msra.mxu0 %v615
      %631 = vmatprep.subr.bf16.mxu0 0
      %632 = vmatpush1.bf16.msra.mxu0 0
      %633 = vmatprep.subr.bf16.mxu0 0
      %634 = vmatpush1.bf16.msra.mxu0 0
      %635 = vmatprep.subr.bf16.mxu0 0
      %636 = vmatpush1.bf16.msra.mxu0 0
      %637 = vmatprep.subr.bf16.mxu0 0
      %638 = vmatpush1.bf16.msra.mxu0 0
      %639 = vmatprep.subr.bf16.mxu0 0
      %640 = vmatpush1.bf16.msra.mxu0 0
      %641 = vmatprep.subr.bf16.mxu0 0
      %642 = vmatpush1.bf16.msra.mxu0 0
      %643 = vmatprep.subr.bf16.mxu0 0
      %644 = vmatpush1.bf16.msra.mxu0 0
      %645 = vmatprep.subr.bf16.mxu0 0
      %646 = vmatpush1.bf16.msra.mxu0 0
      %647 = vmatprep.subr.bf16.mxu0 0
      %648 = vmatpush1.bf16.msra.mxu0 0
      %649 = vmatprep.subr.bf16.mxu0 0
      %650 = vmatpush1.bf16.msra.mxu0 0
      %651 = vmatprep.subr.bf16.mxu0 0
      %652 = vmatpush1.bf16.msra.mxu0 0
      %653 = vmatprep.subr.bf16.mxu0 0
      %654 = vmatpush1.bf16.msra.mxu0 0
      %655 = vmatprep.mubr.bf16.mxu0 0
      %656 = vmatmul.mubr.bf16.gmra.mrb[0].mxu0 %v621
      %v657 = vpop.f32.mrb[0].mxu0
      %v658 = vadd.f32 0.0, %v657
      %v659 = vpop.f32.mrb[0].mxu0
      %v660 = vpop.f32.mrb[0].mxu0
      %v661 = vadd.f32 0.0, %v660
      %v662 = vpop.f32.mrb[0].mxu0
      %663 = vdwg.mxu0
      %v664 = vadd.f32 %v493, %v658
      %v665 = vadd.f32 %v496, %v661
      %v666 = vld [vmem:[%s4] sm:$0x1]
      %v668 = vlaneseq
      %v669 = vshrl.u32 %v668, 7
      %v670 = vsub.s32 0, %v669
      %v671 = vrot.slane %v666, %v670
      %v673 = vadd.f32 %v664, %v671
      %v674 = vadd.f32 %v665, %v671
      %675 = vst.msk [vmem:[%s224] sm:$0xff] %vm386, %v673
      %676 = vst.msk [vmem:[%s224 + $0x8] sm:$0xff] %vm386, %v674
      %p677 = scmp.lt.s32.totalorder %s16, 1
      %s678 = scalar_select %p677, %s16, 1
      %s679 = smul.addr %s678, 2
      %s680 = smul.addr %s679, 8
      %s681 = scalar_lea.vmem %s5, %s680
      // Predicated region
      $region41: #{residual_block.2} parent=39 // pred_check
        %p682 = pneg %p144
      $region42: #{residual_block.2} parent=39 // pred_check_branch
        %684 = sbr.rel (%p682) target = $region44
      $region43: #{residual_block.2} parent=39 // pred_region
        _
      $region44: #{residual_block.2} parent=39 // pred_fallthru
        _
    $region40: #{residual_block.2} parent=5 // pred_fallthru
      _
    %p685 = scmp.le.s32.totalorder 2, %s11
    // Predicated region
    $region45: #{residual_block.2} parent=5 // pred_check
      %p686 = pneg %p685
    $region46: #{residual_block.2} parent=5 // pred_check_branch
      %688 = sbr.rel (%p686) target = $region48
    $region47: #{residual_block.2} parent=5 // pred_region
      %s689 = ssub.s32 %s11, 2
      // Predicated region
      $region49: #{residual_block.2} parent=47 // pred_check
        %p690 = pneg %p150
      $region50: #{residual_block.2} parent=47 // pred_check_branch
        %692 = sbr.rel (%p690) target = $region52
      $region51: #{residual_block.2} parent=47 // pred_region
        %p693 = scmp.lt.s32.totalorder %s17, 1
        %s694 = scalar_select %p693, %s17, 1
        %s695 = smul.addr %s694, 2
        %s696 = smul.addr %s695, 8
        %s697 = scalar_lea.vmem %s5, %s696
      $region52: #{residual_block.2} parent=47 // pred_fallthru
        _
    $region48: #{residual_block.2} parent=5 // pred_fallthru
      _
  $region6: #{residual_block.2} parent=0 // loop_footer
    %s15 = sadd.s32 1, %s11
  $region7: #{residual_block.2} parent=0 // loop_footer_branch
    %10 = sbr.rel target = $region3
  $region8: #{residual_block.2} parent=0 // loop_exit
    _

// kernel: tile.43
$region0: #{tile.43}
  #allocation0 [shape = 's32[1]{0}', space=sflag, size = 0x4, scoped, tag = 'scoped memory for tile.43']
  %s0 = inlined_call_operand.vmem [shape: f32[8], index: 0, kind: input, shape index: {}]
  %s1 = inlined_call_operand.vmem [shape: f32[16,8], index: 1, kind: output, shape index: {}]
  // Predicated region
  $region2: #{tile.43} parent=0 // pred_check
    _
  $region3: #{tile.43} parent=0 // pred_check_branch
    %3 = sbr.rel (0) target = $region5
  $region4: #{tile.43} parent=0 // pred_region
    _
  $region5: #{tile.43} parent=0 // pred_fallthru
    _
  %v4 = vld [vmem:[%s0] ss:$0 sm:$0xff]
  %5 = vst [vmem:[%s1] sm:$0xff] %v4
  %s6 = scalar_lea.vmem %s1, 8
  %7 = vst [vmem:[%s6] sm:$0xff] %v4

// kernel: tile.44
$region0: #{tile.44}
  %s0 = inlined_call_operand.vmem [shape: f32[16,8], index: 0, kind: input, shape index: {}]
  %s1 = inlined_call_operand.vmem [shape: f32[1,128], index: 1, kind: output, shape index: {}]
  $region1: #{tile.44} parent=0
    #allocation0 [shape = 'u8[4096]{0}', space=vmem, size = 0x1000, scoped, tag = 'scoped mem for output reshape']
    %v2 = vld [vmem:[%s0] sm:$0x1]
    %vm3 = vcmask 64512
    %4 = vst.msk [vmem:[#allocation0] sm:$0x1] %vm3, %v2
    %s5 = scalar_lea.vmem %s0, 15
    %v6 = vld [vmem:[%s5] sm:$0x1]
    %7 = vrot.lane.b32.xlu0 %v6, 120
    %v8 = vpop.permute.xlu0 %7
    %vm9 = vcmask 1048512
    %10 = vst.msk [vmem:[#allocation0] sm:$0x1] %vm9, %v8
    %s11 = scalar_lea.vmem %s0, 14
    %v12 = vld [vmem:[%s11] sm:$0x1]
    %13 = vrot.lane.b32.xlu0 %v12, 112
    %v14 = vpop.permute.xlu0 %13
    %vm15 = vcmask 982912
    %16 = vst.msk [vmem:[#allocation0] sm:$0x1] %vm15, %v14
    %s17 = scalar_lea.vmem %s0, 13
    %v18 = vld [vmem:[%s17] sm:$0x1]
    %19 = vrot.lane.b32.xlu0 %v18, 104
    %v20 = vpop.permute.xlu0 %19
    %vm21 = vcmask 917312
    %22 = vst.msk [vmem:[#allocation0] sm:$0x1] %vm21, %v20
    %s23 = scalar_lea.vmem %s0, 12
    %v24 = vld [vmem:[%s23] sm:$0x1]
    %25 = vrot.lane.b32.xlu0 %v24, 96
    %v26 = vpop.permute.xlu0 %25
    %vm27 = vcmask 851712
    %28 = vst.msk [vmem:[#allocation0] sm:$0x1] %vm27, %v26
    %s29 = scalar_lea.vmem %s0, 11
    %v30 = vld [vmem:[%s29] sm:$0x1]
    %31 = vrot.lane.b32.xlu0 %v30, 88
    %v32 = vpop.permute.xlu0 %31
    %vm33 = vcmask 786112
    %34 = vst.msk [vmem:[#allocation0] sm:$0x1] %vm33, %v32
    %s35 = scalar_lea.vmem %s0, 10
    %v36 = vld [vmem:[%s35] sm:$0x1]
    %37 = vrot.lane.b32.xlu0 %v36, 80
    %v38 = vpop.permute.xlu0 %37
    %vm39 = vcmask 720512
    %40 = vst.msk [vmem:[#allocation0] sm:$0x1] %vm39, %v38
    %s41 = scalar_lea.vmem %s0, 9
    %v42 = vld [vmem:[%s41] sm:$0x1]
    %43 = vrot.lane.b32.xlu0 %v42, 72
    %v44 = vpop.permute.xlu0 %43
    %vm45 = vcmask 654912
    %46 = vst.msk [vmem:[#allocation0] sm:$0x1] %vm45, %v44
    %s47 = scalar_lea.vmem %s0, 8
    %v48 = vld [vmem:[%s47] sm:$0x1]
    %49 = vrot.lane.b32.xlu0 %v48, 64
    %v50 = vpop.permute.xlu0 %49
    %vm51 = vcmask 589312
    %52 = vst.msk [vmem:[#allocation0] sm:$0x1] %vm51, %v50
    %s53 = scalar_lea.vmem %s0, 7
    %v54 = vld [vmem:[%s53] sm:$0x1]
    %55 = vrot.lane.b32.xlu0 %v54, 56
    %v56 = vpop.permute.xlu0 %55
    %vm57 = vcmask 523712
    %58 = vst.msk [vmem:[#allocation0] sm:$0x1] %vm57, %v56
    %s59 = scalar_lea.vmem %s0, 6
    %v60 = vld [vmem:[%s59] sm:$0x1]
    %61 = vrot.lane.b32.xlu0 %v60, 48
    %v62 = vpop.permute.xlu0 %61
    %vm63 = vcmask 458112
    %64 = vst.msk [vmem:[#allocation0] sm:$0x1] %vm63, %v62
    %s65 = scalar_lea.vmem %s0, 5
    %v66 = vld [vmem:[%s65] sm:$0x1]
    %67 = vrot.lane.b32.xlu0 %v66, 40
    %v68 = vpop.permute.xlu0 %67
    %vm69 = vcmask 392512
    %70 = vst.msk [vmem:[#allocation0] sm:$0x1] %vm69, %v68
    %s71 = scalar_lea.vmem %s0, 4
    %v72 = vld [vmem:[%s71] sm:$0x1]
    %73 = vrot.lane.b32.xlu0 %v72, 32
    %v74 = vpop.permute.xlu0 %73
    %vm75 = vcmask 326912
    %76 = vst.msk [vmem:[#allocation0] sm:$0x1] %vm75, %v74
    %s77 = scalar_lea.vmem %s0, 3
    %v78 = vld [vmem:[%s77] sm:$0x1]
    %79 = vrot.lane.b32.xlu0 %v78, 24
    %v80 = vpop.permute.xlu0 %79
    %vm81 = vcmask 261312
    %82 = vst.msk [vmem:[#allocation0] sm:$0x1] %vm81, %v80
    %s83 = scalar_lea.vmem %s0, 2
    %v84 = vld [vmem:[%s83] sm:$0x1]
    %85 = vrot.lane.b32.xlu0 %v84, 16
    %v86 = vpop.permute.xlu0 %85
    %vm87 = vcmask 195712
    %88 = vst.msk [vmem:[#allocation0] sm:$0x1] %vm87, %v86
    %s89 = scalar_lea.vmem %s0, 1
    %v90 = vld [vmem:[%s89] sm:$0x1]
    %91 = vrot.lane.b32.xlu0 %v90, 8
    %v92 = vpop.permute.xlu0 %91
    %vm93 = vcmask 130112
    %94 = vst.msk [vmem:[#allocation0] sm:$0x1] %vm93, %v92
    %s96 = sshllo.u32 0, 1
    %v98 = vld [vmem:[#allocation0] sm:%s96]
    %s99 = sshllo.u32 0, 1
    %100 = vst [vmem:[%s1] sm:%s99] %v98

// kernel: residual_block.3
$region0: #{residual_block.3}
  #allocation0 [shape = 'u32[]', space=smem, size = 0x4, offset = 0x4, fixed_abs, tag = 'smem constant byte address 0x4 - core index']
  #allocation1 [shape = 'u32[144,128]{1,0:T(1,128)}', space=vmem, size = 0x12000, scoped, tag = 'internal scratch']
  %s0 = inlined_call_operand.vmem [shape: f32[2,16,64], index: 0, kind: input, shape index: {}]
  %s1 = inlined_call_operand.vmem [shape: f32[2,16,64], index: 1, kind: input, shape index: {}]
  %s2 = inlined_call_operand.vmem [shape: f32[1,64], index: 2, kind: input, shape index: {}]
  %s3 = inlined_call_operand.vmem [shape: f32[1,64], index: 3, kind: input, shape index: {}]
  %s4 = inlined_call_operand.vmem [shape: bf16[3,64,128], index: 4, kind: input, shape index: {}]
  %s5 = inlined_call_operand.vmem [shape: f32[1,128], index: 5, kind: input, shape index: {}]
  %s6 = inlined_call_operand.vmem [shape: bf16[64,128], index: 6, kind: input, shape index: {}]
  %s7 = inlined_call_operand.vmem [shape: f32[1,128], index: 7, kind: input, shape index: {}]
  %s8 = inlined_call_operand.vmem [shape: f32[2,16,128], index: 8, kind: output, shape index: {}]
  %s9 = sld [smem:[#allocation0]]
  $region65: #{residual_block.3} parent=0
    _
  %s11 = ssub.s32 1, %s9
  %s12 = scalar_select 0, %s11, %s9
  loop: start=0, step=1, limit=4
  $region2: #{residual_block.3} parent=0 // loop_pre_header
    _
  $region3: #{residual_block.3} parent=0 // loop_header
    %s14 = sphi 0, %s18
    %p15 = scmp.ge.s32.totalorder %s14, 4
    %s24 = sphi 0, %s26
    %s27 = sphi 0, %s24
    %s28 = sphi 0, %s27
    %s44 = sphi 0, %s28
    %s50 = sphi 0, %s52
    %s53 = sphi 0, %s50
    %s54 = sphi 0, %s53
    %s70 = sphi 0, %s54
    %s74 = sphi 0, %s74
    %s76 = sphi 0, %s74
    %s77 = sphi 0, %s76
    %s91 = sphi 0, %s77
    %s95 = sphi 0, %s95
    %s97 = sphi 0, %s95
    %s98 = sphi 0, %s97
    %s112 = sphi 0, %s98
    %s116 = sphi 0, %s116
    %s118 = sphi 0, %s116
    %s119 = sphi 0, %s118
    %s133 = sphi 0, %s119
    %s137 = sphi 0, %s137
    %s139 = sphi 0, %s137
    %s140 = sphi 0, %s139
    %s154 = sphi 0, %s140
    %s158 = sphi 0, %s158
    %s160 = sphi 0, %s158
    %s161 = sphi 0, %s160
    %s175 = sphi 0, %s161
    %s179 = sphi 0, %s179
    %s181 = sphi 0, %s179
    %s182 = sphi 0, %s181
    %s196 = sphi 0, %s182
    %s202 = sphi 0, %s204
    %s205 = sphi 0, %s202
    %s206 = sphi 0, %s205
    %s222 = sphi 0, %s206
  $region4: #{residual_block.3} parent=0 // loop_header_branch
    %17 = sbr.rel (%p15) target = $region8
  $region5: #{residual_block.3} parent=0 // loop_body
    %s19 = ssub.s32 %s14, 1
    %s20 = ssub.s32 %s14, 2
    %s21 = sadd.s32 %s14, 1
    %s22 = ssub.s32 %s14, %s21
    %p23 = scmp.eq.s32.totalorder %s22, 0
    %s25 = sadd.s32 %s24, 1
    %s26 = scalar_select %p23, %s24, %s25
    %p29 = pneg %p23
    %p30 = scmp.eq.s32.totalorder %s14, 1
    %p31 = por %p29, %p30
    %p32 = scmp.ne.s32.totalorder %s24, %s27
    %p33 = scmp.eq.s32.totalorder %s14, 0
    %p34 = por %p32, %p33
    %p35 = scmp.ne.s32.totalorder %s24, %s27
    %p36 = scmp.eq.s32.totalorder %s19, 1
    %p37 = por %p35, %p36
    %p38 = scmp.ne.s32.totalorder %s27, %s28
    %p39 = scmp.eq.s32.totalorder %s19, 0
    %p40 = por %p38, %p39
    %p41 = scmp.ne.s32.totalorder %s27, %s28
    %p42 = scmp.eq.s32.totalorder %s20, 1
    %p43 = por %p41, %p42
    %p45 = scmp.ne.s32.totalorder %s28, %s44
    %p46 = scmp.eq.s32.totalorder %s20, 0
    %p47 = por %p45, %p46
    %s48 = ssub.s32 %s14, %s21
    %p49 = scmp.eq.s32.totalorder %s48, 0
    %s51 = sadd.s32 %s50, 1
    %s52 = scalar_select %p49, %s50, %s51
    %p55 = pneg %p49
    %p56 = scmp.eq.s32.totalorder %s14, 1
    %p57 = por %p55, %p56
    %p58 = scmp.ne.s32.totalorder %s50, %s53
    %p59 = scmp.eq.s32.totalorder %s14, 0
    %p60 = por %p58, %p59
    %p61 = scmp.ne.s32.totalorder %s50, %s53
    %p62 = scmp.eq.s32.totalorder %s19, 1
    %p63 = por %p61, %p62
    %p64 = scmp.ne.s32.totalorder %s53, %s54
    %p65 = scmp.eq.s32.totalorder %s19, 0
    %p66 = por %p64, %p65
    %p67 = scmp.ne.s32.totalorder %s53, %s54
    %p68 = scmp.eq.s32.totalorder %s20, 1
    %p69 = por %p67, %p68
    %p71 = scmp.ne.s32.totalorder %s54, %s70
    %p72 = scmp.eq.s32.totalorder %s20, 0
    %p73 = por %p71, %p72
    %s75 = sadd.s32 %s74, 1
    %p78 = scmp.eq.s32.totalorder %s14, 1
    %p79 = scmp.ne.s32.totalorder %s74, %s76
    %p80 = scmp.eq.s32.totalorder %s14, 0
    %p81 = por %p79, %p80
    %p82 = scmp.ne.s32.totalorder %s74, %s76
    %p83 = scmp.eq.s32.totalorder %s19, 1
    %p84 = por %p82, %p83
    %p85 = scmp.ne.s32.totalorder %s76, %s77
    %p86 = scmp.eq.s32.totalorder %s19, 0
    %p87 = por %p85, %p86
    %p88 = scmp.ne.s32.totalorder %s76, %s77
    %p89 = scmp.eq.s32.totalorder %s20, 1
    %p90 = por %p88, %p89
    %p92 = scmp.ne.s32.totalorder %s77, %s91
    %p93 = scmp.eq.s32.totalorder %s20, 0
    %p94 = por %p92, %p93
    %s96 = sadd.s32 %s95, 1
    %p99 = scmp.eq.s32.totalorder %s14, 1
    %p100 = scmp.ne.s32.totalorder %s95, %s97
    %p101 = scmp.eq.s32.totalorder %s14, 0
    %p102 = por %p100, %p101
    %p103 = scmp.ne.s32.totalorder %s95, %s97
    %p104 = scmp.eq.s32.totalorder %s19, 1
    %p105 = por %p103, %p104
    %p106 = scmp.ne.s32.totalorder %s97, %s98
    %p107 = scmp.eq.s32.totalorder %s19, 0
    %p108 = por %p106, %p107
    %p109 = scmp.ne.s32.totalorder %s97, %s98
    %p110 = scmp.eq.s32.totalorder %s20, 1
    %p111 = por %p109, %p110
    %p113 = scmp.ne.s32.totalorder %s98, %s112
    %p114 = scmp.eq.s32.totalorder %s20, 0
    %p115 = por %p113, %p114
    %s117 = sadd.s32 %s116, 1
    %p120 = scmp.eq.s32.totalorder %s14, 1
    %p121 = scmp.ne.s32.totalorder %s116, %s118
    %p122 = scmp.eq.s32.totalorder %s14, 0
    %p123 = por %p121, %p122
    %p124 = scmp.ne.s32.totalorder %s116, %s118
    %p125 = scmp.eq.s32.totalorder %s19, 1
    %p126 = por %p124, %p125
    %p127 = scmp.ne.s32.totalorder %s118, %s119
    %p128 = scmp.eq.s32.totalorder %s19, 0
    %p129 = por %p127, %p128
    %p130 = scmp.ne.s32.totalorder %s118, %s119
    %p131 = scmp.eq.s32.totalorder %s20, 1
    %p132 = por %p130, %p131
    %p134 = scmp.ne.s32.totalorder %s119, %s133
    %p135 = scmp.eq.s32.totalorder %s20, 0
    %p136 = por %p134, %p135
    %s138 = sadd.s32 %s137, 1
    %p141 = scmp.eq.s32.totalorder %s14, 1
    %p142 = scmp.ne.s32.totalorder %s137, %s139
    %p143 = scmp.eq.s32.totalorder %s14, 0
    %p144 = por %p142, %p143
    %p145 = scmp.ne.s32.totalorder %s137, %s139
    %p146 = scmp.eq.s32.totalorder %s19, 1
    %p147 = por %p145, %p146
    %p148 = scmp.ne.s32.totalorder %s139, %s140
    %p149 = scmp.eq.s32.totalorder %s19, 0
    %p150 = por %p148, %p149
    %p151 = scmp.ne.s32.totalorder %s139, %s140
    %p152 = scmp.eq.s32.totalorder %s20, 1
    %p153 = por %p151, %p152
    %p155 = scmp.ne.s32.totalorder %s140, %s154
    %p156 = scmp.eq.s32.totalorder %s20, 0
    %p157 = por %p155, %p156
    %s159 = sadd.s32 %s158, 1
    %p162 = scmp.eq.s32.totalorder %s14, 1
    %p163 = scmp.ne.s32.totalorder %s158, %s160
    %p164 = scmp.eq.s32.totalorder %s14, 0
    %p165 = por %p163, %p164
    %p166 = scmp.ne.s32.totalorder %s158, %s160
    %p167 = scmp.eq.s32.totalorder %s19, 1
    %p168 = por %p166, %p167
    %p169 = scmp.ne.s32.totalorder %s160, %s161
    %p170 = scmp.eq.s32.totalorder %s19, 0
    %p171 = por %p169, %p170
    %p172 = scmp.ne.s32.totalorder %s160, %s161
    %p173 = scmp.eq.s32.totalorder %s20, 1
    %p174 = por %p172, %p173
    %p176 = scmp.ne.s32.totalorder %s161, %s175
    %p177 = scmp.eq.s32.totalorder %s20, 0
    %p178 = por %p176, %p177
    %s180 = sadd.s32 %s179, 1
    %p183 = scmp.eq.s32.totalorder %s14, 1
    %p184 = scmp.ne.s32.totalorder %s179, %s181
    %p185 = scmp.eq.s32.totalorder %s14, 0
    %p186 = por %p184, %p185
    %p187 = scmp.ne.s32.totalorder %s179, %s181
    %p188 = scmp.eq.s32.totalorder %s19, 1
    %p189 = por %p187, %p188
    %p190 = scmp.ne.s32.totalorder %s181, %s182
    %p191 = scmp.eq.s32.totalorder %s19, 0
    %p192 = por %p190, %p191
    %p193 = scmp.ne.s32.totalorder %s181, %s182
    %p194 = scmp.eq.s32.totalorder %s20, 1
    %p195 = por %p193, %p194
    %p197 = scmp.ne.s32.totalorder %s182, %s196
    %p198 = scmp.eq.s32.totalorder %s20, 0
    %p199 = por %p197, %p198
    %s200 = ssub.s32 %s14, %s21
    %p201 = scmp.eq.s32.totalorder %s200, 0
    %s203 = sadd.s32 %s202, 1
    %s204 = scalar_select %p201, %s202, %s203
    %p207 = pneg %p201
    %p208 = scmp.eq.s32.totalorder %s14, 1
    %p209 = por %p207, %p208
    %p210 = scmp.ne.s32.totalorder %s202, %s205
    %p211 = scmp.eq.s32.totalorder %s14, 0
    %p212 = por %p210, %p211
    %p213 = scmp.ne.s32.totalorder %s202, %s205
    %p214 = scmp.eq.s32.totalorder %s19, 1
    %p215 = por %p213, %p214
    %p216 = scmp.ne.s32.totalorder %s205, %s206
    %p217 = scmp.eq.s32.totalorder %s19, 0
    %p218 = por %p216, %p217
    %p219 = scmp.ne.s32.totalorder %s205, %s206
    %p220 = scmp.eq.s32.totalorder %s20, 1
    %p221 = por %p219, %p220
    %p223 = scmp.ne.s32.totalorder %s206, %s222
    %p224 = scmp.eq.s32.totalorder %s20, 0
    %p225 = por %p223, %p224
    %p226 = scmp.le.s32.totalorder 1, %s14
    %p227 = scmp.lt.s32.totalorder %s14, 3
    %p228 = pnand %p226, %p227
    %p229 = pneg %p228
    // Predicated region
    $region9: #{residual_block.3} parent=5 // pred_check
      _
    $region10: #{residual_block.3} parent=5 // pred_check_branch
      %231 = sbr.rel (%p228) target = $region12
    $region11: #{residual_block.3} parent=5 // pred_region
      %s232 = ssub.s32 %s14, 1
      // Predicated region
      $region13: #{residual_block.3} parent=11 // pred_check
        %p233 = pneg %p87
      $region14: #{residual_block.3} parent=11 // pred_check_branch
        %235 = sbr.rel (%p233) target = $region16
      $region15: #{residual_block.3} parent=11 // pred_region
        _
      $region16: #{residual_block.3} parent=11 // pred_fallthru
        _
      // Predicated region
      $region17: #{residual_block.3} parent=11 // pred_check
        %p236 = pneg %p108
      $region18: #{residual_block.3} parent=11 // pred_check_branch
        %238 = sbr.rel (%p236) target = $region20
      $region19: #{residual_block.3} parent=11 // pred_region
        _
      $region20: #{residual_block.3} parent=11 // pred_fallthru
        _
      // Predicated region
      $region21: #{residual_block.3} parent=11 // pred_check
        %p239 = pneg %p129
      $region22: #{residual_block.3} parent=11 // pred_check_branch
        %241 = sbr.rel (%p239) target = $region24
      $region23: #{residual_block.3} parent=11 // pred_region
        _
      $region24: #{residual_block.3} parent=11 // pred_fallthru
        _
      // Predicated region
      $region25: #{residual_block.3} parent=11 // pred_check
        %p242 = pneg %p150
      $region26: #{residual_block.3} parent=11 // pred_check_branch
        %244 = sbr.rel (%p242) target = $region28
      $region27: #{residual_block.3} parent=11 // pred_region
        _
      $region28: #{residual_block.3} parent=11 // pred_fallthru
        _
      // Predicated region
      $region29: #{residual_block.3} parent=11 // pred_check
        %p245 = pneg %p171
      $region30: #{residual_block.3} parent=11 // pred_check_branch
        %247 = sbr.rel (%p245) target = $region32
      $region31: #{residual_block.3} parent=11 // pred_region
        _
      $region32: #{residual_block.3} parent=11 // pred_fallthru
        _
      // Predicated region
      $region33: #{residual_block.3} parent=11 // pred_check
        %p248 = pneg %p192
      $region34: #{residual_block.3} parent=11 // pred_check_branch
        %250 = sbr.rel (%p248) target = $region36
      $region35: #{residual_block.3} parent=11 // pred_region
        _
      $region36: #{residual_block.3} parent=11 // pred_fallthru
        _
    $region12: #{residual_block.3} parent=5 // pred_fallthru
      _
    %p251 = scmp.lt.s32.totalorder %s14, 2
    // Predicated region
    $region37: #{residual_block.3} parent=5 // pred_check
      %p252 = pneg %p251
    $region38: #{residual_block.3} parent=5 // pred_check_branch
      %254 = sbr.rel (%p252) target = $region40
    $region39: #{residual_block.3} parent=5 // pred_region
      // Predicated region
      $region41: #{residual_block.3} parent=39 // pred_check
        %p255 = pneg %p34
      $region42: #{residual_block.3} parent=39 // pred_check_branch
        %257 = sbr.rel (%p255) target = $region44
      $region43: #{residual_block.3} parent=39 // pred_region
        %p258 = scmp.lt.s32.totalorder %s14, 1
        %s259 = scalar_select %p258, %s14, 1
        %s260 = smul.addr %s259, 2
        %s261 = smul.addr %s260, 8
        %s262 = scalar_lea.vmem %s0, %s261
      $region44: #{residual_block.3} parent=39 // pred_fallthru
        _
      // Predicated region
      $region45: #{residual_block.3} parent=39 // pred_check
        %p263 = pneg %p60
      $region46: #{residual_block.3} parent=39 // pred_check_branch
        %265 = sbr.rel (%p263) target = $region48
      $region47: #{residual_block.3} parent=39 // pred_region
        %p266 = scmp.lt.s32.totalorder %s14, 1
        %s267 = scalar_select %p266, %s14, 1
        %s268 = smul.addr %s267, 2
        %s269 = smul.addr %s268, 8
        %s270 = scalar_lea.vmem %s1, %s269
      $region48: #{residual_block.3} parent=39 // pred_fallthru
        _
    $region40: #{residual_block.3} parent=5 // pred_fallthru
      _
    %p271 = scmp.le.s32.totalorder 1, %s14
    %p272 = scmp.lt.s32.totalorder %s14, 3
    %p273 = pnand %p271, %p272
    %p274 = pneg %p273
    // Predicated region
    $region49: #{residual_block.3} parent=5 // pred_check
      _
    $region50: #{residual_block.3} parent=5 // pred_check_branch
      %276 = sbr.rel (%p273) target = $region52
    $region51: #{residual_block.3} parent=5 // pred_region
      %s277 = ssub.s32 %s14, 1
      %p278 = scmp.lt.s32.totalorder %s19, 1
      %s279 = scalar_select %p278, %s19, 1
      %s280 = smul.addr %s279, 2
      %s281 = smul.addr %s280, 8
      %s282 = scalar_lea.vmem %s0, %s281
      %p283 = pneg %p40
      %p284 = pneg %p37
      %p285 = scmp.lt.s32.totalorder %s19, 1
      %s286 = scalar_select %p285, %s19, 1
      %s287 = smul.addr %s286, 2
      %s288 = smul.addr %s287, 8
      %s289 = scalar_lea.vmem %s1, %s288
      %p290 = pneg %p66
      %p291 = pneg %p63
      %p292 = pneg %p87
      %p293 = pneg %p84
      %p294 = pneg %p108
      %p295 = pneg %p105
      %p296 = pneg %p129
      %p297 = pneg %p126
      %p298 = pneg %p150
      %p299 = pneg %p147
      %p300 = pneg %p171
      %p301 = pneg %p168
      %p302 = pneg %p192
      %p303 = pneg %p189
      %p304 = pneg %p218
      %p305 = pneg %p215
      %p306 = scmp.lt.s32.totalorder %s19, 1
      %s307 = scalar_select %p306, %s19, 1
      %s308 = smul.addr %s307, 2
      %s309 = smul.addr %s308, 8
      %s310 = scalar_lea.vmem %s8, %s309
      %p311 = scmp.lt.s32.totalorder %s19, 1
      %s312 = scalar_select %p311, %s19, 1
      %s313 = smul.addr %s312, 2
      %s314 = smul.addr %s313, 8
      %s315 = scalar_lea.vmem %s0, %s314
      %p316 = scmp.lt.s32.totalorder %s19, 1
      %s317 = scalar_select %p316, %s19, 1
      %s318 = smul.addr %s317, 2
      %s319 = smul.addr %s318, 8
      %s320 = scalar_lea.vmem %s1, %s319
      %p321 = scmp.lt.s32.totalorder %s19, 1
      %s322 = scalar_select %p321, %s19, 1
      %s323 = smul.addr %s322, 2
      %s324 = smul.addr %s323, 8
      %s325 = scalar_lea.vmem %s8, %s324
      %v327 = vld [vmem:[%s315] sm:$0xff]
      %v328 = vld [vmem:[%s315 + $0x8] sm:$0xff]
      %v329 = vld [vmem:[%s2] sm:$0x1]
      %v331 = vlaneseq
      %v332 = vshrl.u32 %v331, 7
      %v333 = vsub.s32 0, %v332
      %v334 = vrot.slane %v329, %v333
      %v336 = vmul.f32 %v327, %v334
      %v337 = vmul.f32 %v328, %v334
      %v338 = vld [vmem:[%s3] sm:$0x1]
      %v340 = vlaneseq
      %v341 = vshrl.u32 %v340, 7
      %v342 = vsub.s32 0, %v341
      %v343 = vrot.slane %v338, %v342
      %v345 = vadd.f32 %v336, %v343
      %v346 = vadd.f32 %v337, %v343
      %v347 = vmax.f32 %v345, 0.0
      %v348 = vmax.f32 %v346, 0.0
      %v349 = vlaneseq
      %v350 = vshrl.u32 %v349, 7
      %v351 = vadd.s32 %v350, 8
      %v352 = vlaneseq
      %v353 = vand.u32 %v352, 127
      %v354 = vsub.s32 %v353, %v350
      %v355 = vsub.s32 %v353, %v351
      %vm356 = vcmp.eq.s32.totalorder %v354, 4294967295
      %vm357 = vcmp.eq.s32.totalorder %v355, 4294967295
      %v358 = vsel %vm356, 1, 0
      %v359 = vsel %vm357, 1, 0
      %v360 = vcvt.s32.f32 %v358
      %v361 = vcvt.s32.f32 %v359
      %vm362 = vcmask 130048
      %v364 = vsel %vm362, %v360, 0
      %v367 = vsel %vm362, %v361, 0
      %369 = vmatprep.subr.mxu0 0.0
      %370 = vmatpush1.msra.mxu0 %v347
      %371 = vmatprep.subr.mxu0 0.0
      %372 = vmatpush1.msra.mxu0 %v348
      %373 = vmatprep.subr.mxu0 0.0
      %374 = vmatpush1.msra.mxu0 0.0
      %375 = vmatprep.subr.mxu0 0.0
      %376 = vmatpush1.msra.mxu0 0.0
      %377 = vmatprep.subr.mxu0 0.0
      %378 = vmatpush1.msra.mxu0 0.0
      %379 = vmatprep.subr.mxu0 0.0
      %380 = vmatpush1.msra.mxu0 0.0
      %381 = vmatprep.subr.mxu0 0.0
      %382 = vmatpush1.msra.mxu0 0.0
      %383 = vmatprep.subr.mxu0 0.0
      %384 = vmatpush1.msra.mxu0 0.0
      %385 = vmatprep.subr.mxu0 0.0
      %386 = vmatpush1.msra.mxu0 0.0
      %387 = vmatprep.subr.mxu0 0.0
      %388 = vmatpush1.msra.mxu0 0.0
      %389 = vmatprep.subr.mxu0 0.0
      %390 = vmatpush1.msra.mxu0 0.0
      %391 = vmatprep.subr.mxu0 0.0
      %392 = vmatpush1.msra.mxu0 0.0
      %393 = vmatprep.subr.mxu0 0.0
      %394 = vmatpush1.msra.mxu0 0.0
      %395 = vmatprep.subr.mxu0 0.0
      %396 = vmatpush1.msra.mxu0 0.0
      %397 = vmatprep.subr.mxu0 0.0
      %398 = vmatpush1.msra.mxu0 0.0
      %399 = vmatprep.subr.mxu0 0.0
      %400 = vmatpush1.msra.mxu0 0.0
      %401 = vmatprep.subr.mxu0 0.0
      %402 = vmatpush1.msra.mxu0 0.0
      %403 = vmatprep.subr.mxu0 0.0
      %404 = vmatpush1.msra.mxu0 0.0
      %405 = vmatprep.subr.mxu0 0.0
      %406 = vmatpush1.msra.mxu0 0.0
      %407 = vmatprep.subr.mxu0 0.0
      %408 = vmatpush1.msra.mxu0 0.0
      %409 = vmatprep.subr.mxu0 0.0
      %410 = vmatpush1.msra.mxu0 0.0
      %411 = vmatprep.subr.mxu0 0.0
      %412 = vmatpush1.msra.mxu0 0.0
      %413 = vmatprep.subr.mxu0 0.0
      %414 = vmatpush1.msra.mxu0 0.0
      %415 = vmatprep.subr.mxu0 0.0
      %416 = vmatpush1.msra.mxu0 0.0
      %417 = vmatprep.subr.mxu0 0.0
      %418 = vmatpush1.msra.mxu0 0.0
      %419 = vmatprep.subr.mxu0 0.0
      %420 = vmatpush1.msra.mxu0 0.0
      %421 = vmatprep.subr.mxu0 0.0
      %422 = vmatpush1.msra.mxu0 0.0
      %423 = vmatprep.subr.mxu0 0.0
      %424 = vmatpush1.msra.mxu0 0.0
      %425 = vmatprep.subr.mxu0 0.0
      %426 = vmatpush1.msra.mxu0 0.0
      %427 = vmatprep.subr.mxu0 0.0
      %428 = vmatpush1.msra.mxu0 0.0
      %429 = vmatprep.subr.mxu0 0.0
      %430 = vmatpush1.msra.mxu0 0.0
      %431 = vmatprep.subr.mxu0 0.0
      %432 = vmatpush1.msra.mxu0 0.0
      %433 = vmatprep.mubr.f32.mxu0 0.0
      %434 = vmatmul.mubr.f32.gmra.mrb[0].mxu0 %v364
      %v435 = vpop.f32.mrb[0].mxu0
      %v436 = vadd.f32 0.0, %v435
      %v437 = vpop.f32.mrb[0].mxu0
      %438 = vmatprep.mubr.f32.mxu0 0.0
      %439 = vmatmul.mubr.f32.gmra.mrb[0].mxu0 %v367
      %v440 = vpop.f32.mrb[0].mxu0
      %v441 = vadd.f32 0.0, %v440
      %v442 = vpop.f32.mrb[0].mxu0
      %443 = vdwg.mxu0
      %v444 = vpack.c.bf16 %v441, %v436
      %v445 = vld [vmem:[%s4] sm:$0xf]
      %v446 = vld [vmem:[%s4 + $0x4] sm:$0xf]
      %v447 = vld [vmem:[%s4 + $0x8] sm:$0xf]
      %v448 = vld [vmem:[%s4 + $0xc] sm:$0xf]
      %v449 = vld [vmem:[%s4 + $0x10] sm:$0xf]
      %v450 = vld [vmem:[%s4 + $0x14] sm:$0xf]
      %v451 = vld [vmem:[%s4 + $0x18] sm:$0xf]
      %v452 = vld [vmem:[%s4 + $0x1c] sm:$0xf]
      %v453 = vpack.c.bf16 %v348, %v347
      %s454 = scalar_lea.vmem %s4, 32
      %v455 = vld [vmem:[%s454] sm:$0xf]
      %v456 = vld [vmem:[%s454 + $0x4] sm:$0xf]
      %v457 = vld [vmem:[%s454 + $0x8] sm:$0xf]
      %v458 = vld [vmem:[%s454 + $0xc] sm:$0xf]
      %v459 = vld [vmem:[%s454 + $0x10] sm:$0xf]
      %v460 = vld [vmem:[%s454 + $0x14] sm:$0xf]
      %v461 = vld [vmem:[%s454 + $0x18] sm:$0xf]
      %v462 = vld [vmem:[%s454 + $0x1c] sm:$0xf]
      %v471 = vunpack.c.l.b16 %v455
      %v472 = vunpack.c.l.b16 %v456
      %v473 = vunpack.c.l.b16 %v457
      %v474 = vunpack.c.l.b16 %v458
      %v475 = vunpack.c.l.b16 %v459
      %v476 = vunpack.c.l.b16 %v460
      %v477 = vunpack.c.l.b16 %v461
      %v478 = vunpack.c.l.b16 %v462
      %v479 = vpack.c.b16 %v472, %v471
      %v480 = vpack.c.b16 %v474, %v473
      %v481 = vpack.c.b16 %v476, %v475
      %v482 = vpack.c.b16 %v478, %v477
      %vm487 = vcmask 523264
      %v489 = vsel %vm487, %v453, 0
      %491 = vmatprep.subr.bf16.mxu0 0
      %492 = vmatpush1.bf16.msra.mxu0 %v479
      %493 = vmatprep.subr.bf16.mxu0 0
      %494 = vmatpush1.bf16.msra.mxu0 %v480
      %495 = vmatprep.subr.bf16.mxu0 0
      %496 = vmatpush1.bf16.msra.mxu0 %v481
      %497 = vmatprep.subr.bf16.mxu0 0
      %498 = vmatpush1.bf16.msra.mxu0 %v482
      %499 = vmatprep.subr.bf16.mxu0 0
      %500 = vmatpush1.bf16.msra.mxu0 0
      %501 = vmatprep.subr.bf16.mxu0 0
      %502 = vmatpush1.bf16.msra.mxu0 0
      %503 = vmatprep.subr.bf16.mxu0 0
      %504 = vmatpush1.bf16.msra.mxu0 0
      %505 = vmatprep.subr.bf16.mxu0 0
      %506 = vmatpush1.bf16.msra.mxu0 0
      %507 = vmatprep.subr.bf16.mxu0 0
      %508 = vmatpush1.bf16.msra.mxu0 0
      %509 = vmatprep.subr.bf16.mxu0 0
      %510 = vmatpush1.bf16.msra.mxu0 0
      %511 = vmatprep.subr.bf16.mxu0 0
      %512 = vmatpush1.bf16.msra.mxu0 0
      %513 = vmatprep.subr.bf16.mxu0 0
      %514 = vmatpush1.bf16.msra.mxu0 0
      %515 = vmatprep.subr.bf16.mxu0 0
      %516 = vmatpush1.bf16.msra.mxu0 0
      %517 = vmatprep.subr.bf16.mxu0 0
      %518 = vmatpush1.bf16.msra.mxu0 0
      %519 = vmatprep.subr.bf16.mxu0 0
      %520 = vmatpush1.bf16.msra.mxu0 0
      %521 = vmatprep.subr.bf16.mxu0 0
      %522 = vmatpush1.bf16.msra.mxu0 0
      %523 = vmatprep.mubr.bf16.mxu0 0
      %524 = vmatmul.mubr.bf16.gmra.mrb[0].mxu0 %v489
      %v525 = vpop.f32.mrb[0].mxu0
      %v526 = vadd.f32 0.0, %v525
      %v527 = vpop.f32.mrb[0].mxu0
      %v528 = vpop.f32.mrb[0].mxu0
      %v529 = vadd.f32 0.0, %v528
      %v530 = vpop.f32.mrb[0].mxu0
      %531 = vdwg.mxu0
      %v540 = vunpack.c.l.b16 %v445
      %v541 = vunpack.c.l.b16 %v446
      %v542 = vunpack.c.l.b16 %v447
      %v543 = vunpack.c.l.b16 %v448
      %v544 = vunpack.c.l.b16 %v449
      %v545 = vunpack.c.l.b16 %v450
      %v546 = vunpack.c.l.b16 %v451
      %v547 = vunpack.c.l.b16 %v452
      %v548 = vpack.c.b16 %v541, %v540
      %v549 = vpack.c.b16 %v543, %v542
      %v550 = vpack.c.b16 %v545, %v544
      %v551 = vpack.c.b16 %v547, %v546
      %v557 = vsel %vm487, %v444, 0
      %559 = vmatprep.subr.bf16.mxu0 0
      %560 = vmatpush1.bf16.msra.mxu0 %v548
      %561 = vmatprep.subr.bf16.mxu0 0
      %562 = vmatpush1.bf16.msra.mxu0 %v549
      %563 = vmatprep.subr.bf16.mxu0 0
      %564 = vmatpush1.bf16.msra.mxu0 %v550
      %565 = vmatprep.subr.bf16.mxu0 0
      %566 = vmatpush1.bf16.msra.mxu0 %v551
      %567 = vmatprep.subr.bf16.mxu0 0
      %568 = vmatpush1.bf16.msra.mxu0 0
      %569 = vmatprep.subr.bf16.mxu0 0
      %570 = vmatpush1.bf16.msra.mxu0 0
      %571 = vmatprep.subr.bf16.mxu0 0
      %572 = vmatpush1.bf16.msra.mxu0 0
      %573 = vmatprep.subr.bf16.mxu0 0
      %574 = vmatpush1.bf16.msra.mxu0 0
      %575 = vmatprep.subr.bf16.mxu0 0
      %576 = vmatpush1.bf16.msra.mxu0 0
      %577 = vmatprep.subr.bf16.mxu0 0
      %578 = vmatpush1.bf16.msra.mxu0 0
      %579 = vmatprep.subr.bf16.mxu0 0
      %580 = vmatpush1.bf16.msra.mxu0 0
      %581 = vmatprep.subr.bf16.mxu0 0
      %582 = vmatpush1.bf16.msra.mxu0 0
      %583 = vmatprep.subr.bf16.mxu0 0
      %584 = vmatpush1.bf16.msra.mxu0 0
      %585 = vmatprep.subr.bf16.mxu0 0
      %586 = vmatpush1.bf16.msra.mxu0 0
      %587 = vmatprep.subr.bf16.mxu0 0
      %588 = vmatpush1.bf16.msra.mxu0 0
      %589 = vmatprep.subr.bf16.mxu0 0
      %590 = vmatpush1.bf16.msra.mxu0 0
      %591 = vmatprep.mubr.bf16.mxu0 0
      %592 = vmatmul.mubr.bf16.gmra.mrb[0].mxu0 %v557
      %v593 = vpop.f32.mrb[0].mxu0
      %v594 = vadd.f32 %v526, %v593
      %v595 = vpop.f32.mrb[0].mxu0
      %v596 = vpop.f32.mrb[0].mxu0
      %v597 = vadd.f32 %v529, %v596
      %v598 = vpop.f32.mrb[0].mxu0
      %599 = vdwg.mxu0
      %vm600 = vcmp.eq.s32.totalorder %v354, 1
      %vm601 = vcmp.eq.s32.totalorder %v355, 1
      %v602 = vsel %vm600, 1, 0
      %v603 = vsel %vm601, 1, 0
      %v604 = vcvt.s32.f32 %v602
      %v605 = vcvt.s32.f32 %v603
      %v607 = vsel %vm362, %v604, 0
      %v610 = vsel %vm362, %v605, 0
      %612 = vmatprep.subr.mxu0 0.0
      %613 = vmatpush1.msra.mxu0 %v347
      %614 = vmatprep.subr.mxu0 0.0
      %615 = vmatpush1.msra.mxu0 %v348
      %616 = vmatprep.subr.mxu0 0.0
      %617 = vmatpush1.msra.mxu0 0.0
      %618 = vmatprep.subr.mxu0 0.0
      %619 = vmatpush1.msra.mxu0 0.0
      %620 = vmatprep.subr.mxu0 0.0
      %621 = vmatpush1.msra.mxu0 0.0
      %622 = vmatprep.subr.mxu0 0.0
      %623 = vmatpush1.msra.mxu0 0.0
      %624 = vmatprep.subr.mxu0 0.0
      %625 = vmatpush1.msra.mxu0 0.0
      %626 = vmatprep.subr.mxu0 0.0
      %627 = vmatpush1.msra.mxu0 0.0
      %628 = vmatprep.subr.mxu0 0.0
      %629 = vmatpush1.msra.mxu0 0.0
      %630 = vmatprep.subr.mxu0 0.0
      %631 = vmatpush1.msra.mxu0 0.0
      %632 = vmatprep.subr.mxu0 0.0
      %633 = vmatpush1.msra.mxu0 0.0
      %634 = vmatprep.subr.mxu0 0.0
      %635 = vmatpush1.msra.mxu0 0.0
      %636 = vmatprep.subr.mxu0 0.0
      %637 = vmatpush1.msra.mxu0 0.0
      %638 = vmatprep.subr.mxu0 0.0
      %639 = vmatpush1.msra.mxu0 0.0
      %640 = vmatprep.subr.mxu0 0.0
      %641 = vmatpush1.msra.mxu0 0.0
      %642 = vmatprep.subr.mxu0 0.0
      %643 = vmatpush1.msra.mxu0 0.0
      %644 = vmatprep.subr.mxu0 0.0
      %645 = vmatpush1.msra.mxu0 0.0
      %646 = vmatprep.subr.mxu0 0.0
      %647 = vmatpush1.msra.mxu0 0.0
      %648 = vmatprep.subr.mxu0 0.0
      %649 = vmatpush1.msra.mxu0 0.0
      %650 = vmatprep.subr.mxu0 0.0
      %651 = vmatpush1.msra.mxu0 0.0
      %652 = vmatprep.subr.mxu0 0.0
      %653 = vmatpush1.msra.mxu0 0.0
      %654 = vmatprep.subr.mxu0 0.0
      %655 = vmatpush1.msra.mxu0 0.0
      %656 = vmatprep.subr.mxu0 0.0
      %657 = vmatpush1.msra.mxu0 0.0
      %658 = vmatprep.subr.mxu0 0.0
      %659 = vmatpush1.msra.mxu0 0.0
      %660 = vmatprep.subr.mxu0 0.0
      %661 = vmatpush1.msra.mxu0 0.0
      %662 = vmatprep.subr.mxu0 0.0
      %663 = vmatpush1.msra.mxu0 0.0
      %664 = vmatprep.subr.mxu0 0.0
      %665 = vmatpush1.msra.mxu0 0.0
      %666 = vmatprep.subr.mxu0 0.0
      %667 = vmatpush1.msra.mxu0 0.0
      %668 = vmatprep.subr.mxu0 0.0
      %669 = vmatpush1.msra.mxu0 0.0
      %670 = vmatprep.subr.mxu0 0.0
      %671 = vmatpush1.msra.mxu0 0.0
      %672 = vmatprep.subr.mxu0 0.0
      %673 = vmatpush1.msra.mxu0 0.0
      %674 = vmatprep.subr.mxu0 0.0
      %675 = vmatpush1.msra.mxu0 0.0
      %676 = vmatprep.mubr.f32.mxu0 0.0
      %677 = vmatmul.mubr.f32.gmra.mrb[0].mxu0 %v607
      %v678 = vpop.f32.mrb[0].mxu0
      %v679 = vadd.f32 0.0, %v678
      %v680 = vpop.f32.mrb[0].mxu0
      %681 = vmatprep.mubr.f32.mxu0 0.0
      %682 = vmatmul.mubr.f32.gmra.mrb[0].mxu0 %v610
      %v683 = vpop.f32.mrb[0].mxu0
      %v684 = vadd.f32 0.0, %v683
      %v685 = vpop.f32.mrb[0].mxu0
      %686 = vdwg.mxu0
      %v687 = vpack.c.bf16 %v684, %v679
      %s688 = scalar_lea.vmem %s4, 64
      %v689 = vld [vmem:[%s688] sm:$0xf]
      %v690 = vld [vmem:[%s688 + $0x4] sm:$0xf]
      %v691 = vld [vmem:[%s688 + $0x8] sm:$0xf]
      %v692 = vld [vmem:[%s688 + $0xc] sm:$0xf]
      %v693 = vld [vmem:[%s688 + $0x10] sm:$0xf]
      %v694 = vld [vmem:[%s688 + $0x14] sm:$0xf]
      %v695 = vld [vmem:[%s688 + $0x18] sm:$0xf]
      %v696 = vld [vmem:[%s688 + $0x1c] sm:$0xf]
      %v705 = vunpack.c.l.b16 %v689
      %v706 = vunpack.c.l.b16 %v690
      %v707 = vunpack.c.l.b16 %v691
      %v708 = vunpack.c.l.b16 %v692
      %v709 = vunpack.c.l.b16 %v693
      %v710 = vunpack.c.l.b16 %v694
      %v711 = vunpack.c.l.b16 %v695
      %v712 = vunpack.c.l.b16 %v696
      %v713 = vpack.c.b16 %v706, %v705
      %v714 = vpack.c.b16 %v708, %v707
      %v715 = vpack.c.b16 %v710, %v709
      %v716 = vpack.c.b16 %v712, %v711
      %v722 = vsel %vm487, %v687, 0
      %724 = vmatprep.subr.bf16.mxu0 0
      %725 = vmatpush1.bf16.msra.mxu0 %v713
      %726 = vmatprep.subr.bf16.mxu0 0
      %727 = vmatpush1.bf16.msra.mxu0 %v714
      %728 = vmatprep.subr.bf16.mxu0 0
      %729 = vmatpush1.bf16.msra.mxu0 %v715
      %730 = vmatprep.subr.bf16.mxu0 0
      %731 = vmatpush1.bf16.msra.mxu0 %v716
      %732 = vmatprep.subr.bf16.mxu0 0
      %733 = vmatpush1.bf16.msra.mxu0 0
      %734 = vmatprep.subr.bf16.mxu0 0
      %735 = vmatpush1.bf16.msra.mxu0 0
      %736 = vmatprep.subr.bf16.mxu0 0
      %737 = vmatpush1.bf16.msra.mxu0 0
      %738 = vmatprep.subr.bf16.mxu0 0
      %739 = vmatpush1.bf16.msra.mxu0 0
      %740 = vmatprep.subr.bf16.mxu0 0
      %741 = vmatpush1.bf16.msra.mxu0 0
      %742 = vmatprep.subr.bf16.mxu0 0
      %743 = vmatpush1.bf16.msra.mxu0 0
      %744 = vmatprep.subr.bf16.mxu0 0
      %745 = vmatpush1.bf16.msra.mxu0 0
      %746 = vmatprep.subr.bf16.mxu0 0
      %747 = vmatpush1.bf16.msra.mxu0 0
      %748 = vmatprep.subr.bf16.mxu0 0
      %749 = vmatpush1.bf16.msra.mxu0 0
      %750 = vmatprep.subr.bf16.mxu0 0
      %751 = vmatpush1.bf16.msra.mxu0 0
      %752 = vmatprep.subr.bf16.mxu0 0
      %753 = vmatpush1.bf16.msra.mxu0 0
      %754 = vmatprep.subr.bf16.mxu0 0
      %755 = vmatpush1.bf16.msra.mxu0 0
      %756 = vmatprep.mubr.bf16.mxu0 0
      %757 = vmatmul.mubr.bf16.gmra.mrb[0].mxu0 %v722
      %v758 = vpop.f32.mrb[0].mxu0
      %v759 = vadd.f32 0.0, %v758
      %v760 = vpop.f32.mrb[0].mxu0
      %v761 = vpop.f32.mrb[0].mxu0
      %v762 = vadd.f32 0.0, %v761
      %v763 = vpop.f32.mrb[0].mxu0
      %764 = vdwg.mxu0
      %v765 = vadd.f32 %v594, %v759
      %v766 = vadd.f32 %v597, %v762
      %v767 = vld [vmem:[%s5] sm:$0x1]
      %v769 = vlaneseq
      %v770 = vshrl.u32 %v769, 7
      %v771 = vsub.s32 0, %v770
      %v772 = vrot.slane %v767, %v771
      %v774 = vadd.f32 %v765, %v772
      %v775 = vadd.f32 %v766, %v772
      %v776 = vld [vmem:[%s320] sm:$0xff]
      %v777 = vld [vmem:[%s320 + $0x8] sm:$0xff]
      %v778 = vpack.c.bf16 %v777, %v776
      %v779 = vld [vmem:[%s6] sm:$0xf]
      %v780 = vld [vmem:[%s6 + $0x4] sm:$0xf]
      %v781 = vld [vmem:[%s6 + $0x8] sm:$0xf]
      %v782 = vld [vmem:[%s6 + $0xc] sm:$0xf]
      %v783 = vld [vmem:[%s6 + $0x10] sm:$0xf]
      %v784 = vld [vmem:[%s6 + $0x14] sm:$0xf]
      %v785 = vld [vmem:[%s6 + $0x18] sm:$0xf]
      %v786 = vld [vmem:[%s6 + $0x1c] sm:$0xf]
      %v787 = vld [vmem:[%s7] sm:$0x1]
      %v789 = vlaneseq
      %v790 = vshrl.u32 %v789, 7
      %v791 = vsub.s32 0, %v790
      %v792 = vrot.slane %v787, %v791
      %v802 = vunpack.c.l.b16 %v779
      %v803 = vunpack.c.l.b16 %v780
      %v804 = vunpack.c.l.b16 %v781
      %v805 = vunpack.c.l.b16 %v782
      %v806 = vunpack.c.l.b16 %v783
      %v807 = vunpack.c.l.b16 %v784
      %v808 = vunpack.c.l.b16 %v785
      %v809 = vunpack.c.l.b16 %v786
      %v810 = vpack.c.b16 %v803, %v802
      %v811 = vpack.c.b16 %v805, %v804
      %v812 = vpack.c.b16 %v807, %v806
      %v813 = vpack.c.b16 %v809, %v808
      %v819 = vsel %vm487, %v778, 0
      %821 = vmatprep.subr.bf16.mxu0 0
      %822 = vmatpush1.bf16.msra.mxu0 %v810
      %823 = vmatprep.subr.bf16.mxu0 0
      %824 = vmatpush1.bf16.msra.mxu0 %v811
      %825 = vmatprep.subr.bf16.mxu0 0
      %826 = vmatpush1.bf16.msra.mxu0 %v812
      %827 = vmatprep.subr.bf16.mxu0 0
      %828 = vmatpush1.bf16.msra.mxu0 %v813
      %829 = vmatprep.subr.bf16.mxu0 0
      %830 = vmatpush1.bf16.msra.mxu0 0
      %831 = vmatprep.subr.bf16.mxu0 0
      %832 = vmatpush1.bf16.msra.mxu0 0
      %833 = vmatprep.subr.bf16.mxu0 0
      %834 = vmatpush1.bf16.msra.mxu0 0
      %835 = vmatprep.subr.bf16.mxu0 0
      %836 = vmatpush1.bf16.msra.mxu0 0
      %837 = vmatprep.subr.bf16.mxu0 0
      %838 = vmatpush1.bf16.msra.mxu0 0
      %839 = vmatprep.subr.bf16.mxu0 0
      %840 = vmatpush1.bf16.msra.mxu0 0
      %841 = vmatprep.subr.bf16.mxu0 0
      %842 = vmatpush1.bf16.msra.mxu0 0
      %843 = vmatprep.subr.bf16.mxu0 0
      %844 = vmatpush1.bf16.msra.mxu0 0
      %845 = vmatprep.subr.bf16.mxu0 0
      %846 = vmatpush1.bf16.msra.mxu0 0
      %847 = vmatprep.subr.bf16.mxu0 0
      %848 = vmatpush1.bf16.msra.mxu0 0
      %849 = vmatprep.subr.bf16.mxu0 0
      %850 = vmatpush1.bf16.msra.mxu0 0
      %851 = vmatprep.subr.bf16.mxu0 0
      %852 = vmatpush1.bf16.msra.mxu0 0
      %853 = vmatprep.mubr.bf16.mxu0 0
      %854 = vmatmul.mubr.bf16.gmra.mrb[0].mxu0 %v819
      %v855 = vpop.f32.mrb[0].mxu0
      %v856 = vadd.f32 %v792, %v855
      %v857 = vpop.f32.mrb[0].mxu0
      %v858 = vpop.f32.mrb[0].mxu0
      %v859 = vadd.f32 %v792, %v858
      %v860 = vpop.f32.mrb[0].mxu0
      %861 = vdwg.mxu0
      %v862 = vadd.f32 %v774, %v856
      %v863 = vadd.f32 %v775, %v859
      %864 = vst [vmem:[%s325] sm:$0xff] %v862
      %865 = vst [vmem:[%s325 + $0x8] sm:$0xff] %v863
      %p866 = scmp.lt.s32.totalorder %s19, 1
      %s867 = scalar_select %p866, %s19, 1
      %s868 = smul.addr %s867, 2
      %s869 = smul.addr %s868, 8
      %s870 = scalar_lea.vmem %s8, %s869
      // Predicated region
      $region53: #{residual_block.3} parent=51 // pred_check
        %p871 = pneg %p215
      $region54: #{residual_block.3} parent=51 // pred_check_branch
        %873 = sbr.rel (%p871) target = $region56
      $region55: #{residual_block.3} parent=51 // pred_region
        _
      $region56: #{residual_block.3} parent=51 // pred_fallthru
        _
    $region52: #{residual_block.3} parent=5 // pred_fallthru
      _
    %p874 = scmp.le.s32.totalorder 2, %s14
    // Predicated region
    $region57: #{residual_block.3} parent=5 // pred_check
      %p875 = pneg %p874
    $region58: #{residual_block.3} parent=5 // pred_check_branch
      %877 = sbr.rel (%p875) target = $region60
    $region59: #{residual_block.3} parent=5 // pred_region
      %s878 = ssub.s32 %s14, 2
      // Predicated region
      $region61: #{residual_block.3} parent=59 // pred_check
        %p879 = pneg %p221
      $region62: #{residual_block.3} parent=59 // pred_check_branch
        %881 = sbr.rel (%p879) target = $region64
      $region63: #{residual_block.3} parent=59 // pred_region
        %p882 = scmp.lt.s32.totalorder %s20, 1
        %s883 = scalar_select %p882, %s20, 1
        %s884 = smul.addr %s883, 2
        %s885 = smul.addr %s884, 8
        %s886 = scalar_lea.vmem %s8, %s885
      $region64: #{residual_block.3} parent=59 // pred_fallthru
        _
    $region60: #{residual_block.3} parent=5 // pred_fallthru
      _
  $region6: #{residual_block.3} parent=0 // loop_footer
    %s18 = sadd.s32 1, %s14
  $region7: #{residual_block.3} parent=0 // loop_footer_branch
    %13 = sbr.rel target = $region3
  $region8: #{residual_block.3} parent=0 // loop_exit
    _

</llo_original>
